<compile_context>
chip_gen: v7x
topology: tpu7x:2x2x1
jax: 0.10.0
libtpu: 0.0.40
codegen_flags: <defaults>
</compile_context>

<pallas_src>
import functools
import math

import numpy as np
import jax
import jax.numpy as jnp
from jax import lax
from jax.experimental import pallas as pl
from jax.experimental.pallas import tpu as pltpu


LANES = 128                     # TPU lane width; feature dims padded to this
DENOM_LANE = LANES - 1          # spare padded lane carrying the softmax denom
VMEM_LIMIT = 48 * 1024 * 1024   # > 32MiB scoped default, < v7x 64MiB physical


# ---------------------------------------------------------------------------
# Fused message-passing kernel.  grid=(niters,) ("arbitrary" -> sequential).
# Per grid step (one message-passing iteration):
#   phase 1: per edge-chunk attention MLP -> p = exp(sigmoid) -> one-hot
#            scatter-add of [p*b_e | p] into the resident rv accumulator
#   finalize: softmax denom + (1+deg) norm + head/tail flags -> r_v,
#             precompute rv_s = r_v@Ws, rv_r = r_v@Wr
#   phase 2: per edge-chunk b_e' = gather(rv_s,row) + gather(rv_r,col)
#            + b_e@Wb + bias; fused w_e = sigmoid(b_e'@ww + bw)
# b_e lives in a VMEM scratch across all grid steps; rv lives in the resident
# output block.
# ---------------------------------------------------------------------------
def _fused_mp_kernel(col_l_ref, row_ref, col_ref, be0_ref,
                     wa1_ref, ba1_ref, wa2_ref, ba2_ref,
                     ws_ref, wr_ref, wb_ref, bu_ref,
                     ww_ref, bw_ref, onepdeg_ref, flags_ref,
                     rv_ref, we_ref, be_s,
                     *, hidden_dim, e_tile, n_tiles):
    n_nodes, n_lanes = rv_ref.shape

    # load the resident edge state once (first message-passing iteration)
    @pl.when(pl.program_id(0) == 0)
    def _load_edges():
        be_s[...] = be0_ref[...]

    lane = lax.broadcasted_iota(jnp.int32, (1, n_lanes), 1)
    denom_tag = (lane == DENOM_LANE).astype(jnp.float32)          # (1, 128)

    # ---- phase 1: attention + fused-denominator scatter into rv accumulator
    rv_ref[...] = jnp.zeros_like(rv_ref)

    @pl.loop(0, n_tiles)
    def _scatter(t):
        start = pl.multiple_of(t * e_tile, e_tile)
        be = be_s[pl.ds(start, e_tile), :]                        # (e_t, 128)
        h1 = jnp.maximum(
            jnp.dot(be, wa1_ref[...], preferred_element_type=jnp.float32)
            + ba1_ref[...], 0.0)
        logit = jnp.sum(h1 * wa2_ref[...], axis=-1, keepdims=True) + ba2_ref[...]
        sig = pl.reciprocal(1.0 + jnp.exp(-logit), approx=True)   # sigmoid
        p = jnp.exp(sig)                                          # (e_t, 1)
        col_t = col_l_ref[pl.ds(t, 1), :]                         # (1, e_t)
        oh = (lax.broadcasted_iota(jnp.int32, (n_nodes, e_tile), 0) == col_t
              ).astype(jnp.float32)                               # (N, e_t)
        # carry p itself in the spare padded lane so ONE MXU pass yields both
        # numerator and denominator
        weighted = be * p + denom_tag * p                         # (e_t, 128)
        rv_ref[...] += jnp.dot(oh, weighted,
                               preferred_element_type=jnp.float32)

    # ---- finalize node state: softmax denom + degree norm + role flags
    acc = rv_ref[...]                                             # (N, 128)
    denom = acc[:, DENOM_LANE:DENOM_LANE + 1]                     # (N, 1)
    safe = jnp.where(denom > 0.0, denom, 1.0)
    b_v = acc * pl.reciprocal(safe * onepdeg_ref[...], approx=True)
    keep = (lane < hidden_dim).astype(jnp.float32)                # zero pad lanes
    r_v = b_v * keep + flags_ref[...]                             # [b_v|head|tail|0]
    rv_ref[...] = r_v

    # precompute r_v @ Ws and r_v @ Wr once per iteration (K=N gathers below)
    rv_s = jnp.dot(r_v, ws_ref[...], preferred_element_type=jnp.float32)
    rv_r = jnp.dot(r_v, wr_ref[...], preferred_element_type=jnp.float32)

    # ---- phase 2: edge update + fused edge-weight head
    @pl.loop(0, n_tiles)
    def _update(t):
        start = pl.multiple_of(t * e_tile, e_tile)
        rows = pl.ds(start, e_tile)
        be = be_s[rows, :]                                        # (e_t, 128)
        eidx = lax.broadcasted_iota(jnp.int32, (e_tile, n_nodes), 1)
        g_row = (eidx == row_ref[rows, :]).astype(jnp.float32)    # (e_t, N)
        g_col = (eidx == col_ref[rows, :]).astype(jnp.float32)    # (e_t, N)
        be_new = (jnp.dot(g_row, rv_s, preferred_element_type=jnp.float32)
                  + jnp.dot(g_col, rv_r, preferred_element_type=jnp.float32)
                  + jnp.dot(be, wb_ref[...], preferred_element_type=jnp.float32)
                  + bu_ref[...])                                  # (e_t, 128)
        be_s[rows, :] = be_new
        # fused edge-weight head; last iteration's values are what persist
        w_logit = (jnp.sum(be_new * ww_ref[...], axis=-1, keepdims=True)
                   + bw_ref[...])                                 # (e_t, 1)
        we_ref[rows, :] = pl.reciprocal(1.0 + jnp.exp(-w_logit), approx=True)


def _fused_message_passing(col_lane, row_sub, col_sub, be_p,
                           wa1_p, ba1_p, wa2_p, ba2_p,
                           ws_p, wr_p, wb_p, bu_p, ww_p, bw_p,
                           onepdeg, flags_p, *, hidden_dim, niters, e_tile):
    e_pad, hp = be_p.shape
    n_nodes = onepdeg.shape[0]
    n_tiles = e_pad // e_tile
    inv = lambda it: (0, 0)     # every operand is grid-invariant / resident
    kernel = functools.partial(_fused_mp_kernel, hidden_dim=hidden_dim,
                               e_tile=e_tile, n_tiles=n_tiles)
    return pl.pallas_call(
        kernel,
        grid=(niters,),
        in_specs=[
            pl.BlockSpec((n_tiles, e_tile), inv),   # col, lane-major per chunk
            pl.BlockSpec((e_pad, 1), inv),          # row, sublane-major
            pl.BlockSpec((e_pad, 1), inv),          # col, sublane-major
            pl.BlockSpec((e_pad, hp), inv),         # initial b_e
            pl.BlockSpec((hp, hp), inv),            # Wa1
            pl.BlockSpec((1, hp), inv),             # ba1
            pl.BlockSpec((1, hp), inv),             # wa2 (row vector)
            pl.BlockSpec((1, 1), inv),              # ba2
            pl.BlockSpec((hp, hp), inv),            # Ws
            pl.BlockSpec((hp, hp), inv),            # Wr
            pl.BlockSpec((hp, hp), inv),            # Wb
            pl.BlockSpec((1, hp), inv),             # upd bias
            pl.BlockSpec((1, hp), inv),             # ew weight (row vector)
            pl.BlockSpec((1, 1), inv),              # ew bias
            pl.BlockSpec((n_nodes, 1), inv),        # 1 + degree
            pl.BlockSpec((n_nodes, hp), inv),       # head/tail flags
        ],
        out_specs=[
            pl.BlockSpec((n_nodes, hp), inv),       # resident rv accumulator
            pl.BlockSpec((e_pad, 1), inv),          # per-edge weight (4 B/edge)
        ],
        out_shape=[
            jax.ShapeDtypeStruct((n_nodes, hp), jnp.float32),
            jax.ShapeDtypeStruct((e_pad, 1), jnp.float32),
        ],
        scratch_shapes=[pltpu.VMEM((e_pad, hp), jnp.float32)],   # resident b_e
        compiler_params=pltpu.CompilerParams(
            dimension_semantics=("arbitrary",),     # iterations are sequential
            vmem_limit_bytes=VMEM_LIMIT),
    )(col_lane, row_sub, col_sub, be_p, wa1_p, ba1_p, wa2_p, ba2_p,
      ws_p, wr_p, wb_p, bu_p, ww_p, bw_p, onepdeg, flags_p)


# ---------------------------------------------------------------------------
# Forward pass wrapper (padding / weight prep / tiny graph-level tail as glue)
# ---------------------------------------------------------------------------
def compass_weight_forward(edge_features, edge_index, node_degrees, batch,
                           heads, tails, g_all_init, params, *, niters=2,
                           training=True, e_tile=128):
    E, F = edge_features.shape
    N = int(node_degrees.shape[0])
    B = int(heads.shape[0])
    G = g_all_init.shape[1]
    H = F + G                       # hidden_dim = dim(b_e)
    R = H + 2                       # role dim = hidden + head/tail flags
    Hp = LANES
    assert R < DENOM_LANE and e_tile % 8 == 0

    row = edge_index[0].astype(jnp.int32)
    col = edge_index[1].astype(jnp.int32)

    # pad edges to a chunk multiple; padded edges use the sentinel node id N
    e_pad = ((E + e_tile - 1) // e_tile) * e_tile
    n_tiles = e_pad // e_tile
    col_full = jnp.full((e_pad,), N, jnp.int32).at[:E].set(col)
    row_full = jnp.full((e_pad,), N, jnp.int32).at[:E].set(row)
    col_lane = col_full.reshape(n_tiles, e_tile)    # lane-major for the scatter
    row_sub = row_full.reshape(e_pad, 1)            # sublane-major for gathers
    col_sub = col_full.reshape(e_pad, 1)

    # b_e = cat([edge_features, g_all.expand(E, -1)]), zero-padded to 128 lanes
    b_e0 = jnp.concatenate(
        [edge_features.astype(jnp.float32),
         jnp.tile(g_all_init.astype(jnp.float32), (E, 1))], axis=1)   # (E, H)
    be_p = jnp.zeros((e_pad, Hp), jnp.float32).at[:E, :H].set(b_e0)

    # node-side constants
    onepdeg = (1.0 + node_degrees.astype(jnp.float32)).reshape(N, 1)
    nodes = jnp.arange(N, dtype=jnp.int32)
    is_head = (nodes == heads[batch]).astype(jnp.float32)
    is_tail = (nodes == tails[batch]).astype(jnp.float32)
    flags_p = (jnp.zeros((N, Hp), jnp.float32)
               .at[:, H].set(is_head).at[:, H + 1].set(is_tail))

    # pad parameters once (zero rows/cols keep the math exact)
    def pad2(w, r, c):
        out = jnp.zeros((r, c), jnp.float32)
        return out.at[:w.shape[0], :w.shape[1]].set(w.astype(jnp.float32))

    wa1_p = pad2(params["att_w1"].T, Hp, Hp)
    ba1_p = pad2(params["att_b1"].reshape(1, -1), 1, Hp)
    wa2_p = pad2(params["att_w2"], 1, Hp)
    ba2_p = params["att_b2"].reshape(1, 1).astype(jnp.float32)

    wu_t = params["upd_w"].T.astype(jnp.float32)          # (2R+H, H)
    ws_p = pad2(wu_t[:R], Hp, Hp)
    wr_p = pad2(wu_t[R:2 * R], Hp, Hp)
    wb_p = pad2(wu_t[2 * R:], Hp, Hp)
    bu_p = pad2(params["upd_b"].reshape(1, -1), 1, Hp)

    ww_p = pad2(params["ew_w"], 1, Hp)
    bw_p = params["ew_b"].reshape(1, 1).astype(jnp.float32)

    # --- the whole message-passing loop + edge-weight head: ONE pallas_call
    rv_p, we_full = _fused_message_passing(
        col_lane, row_sub, col_sub, be_p,
        wa1_p, ba1_p, wa2_p, ba2_p,
        ws_p, wr_p, wb_p, bu_p, ww_p, bw_p,
        onepdeg, flags_p,
        hidden_dim=H, niters=niters, e_tile=e_tile)

    w_e = we_full[:E]                                     # (E, 1)

    # --- tiny graph-level tail (num_graphs rows): plain-JAX glue
    b_v = rv_p[:, :H]
    g_max = jax.ops.segment_max(b_v, batch, num_segments=B)
    g_G = jnp.concatenate([g_max, b_v[heads], b_v[tails]], axis=1)   # (B, 3H)
    if training:
        hgw = jnp.maximum(g_G @ params["gw_w1"].T + params["gw_b1"], 0.0)
        logits = hgw @ params["gw_w2"].T + params["gw_b2"]
        w_k = jax.nn.softmax(logits, axis=0)
        g_all = jnp.sum(w_k * g_G, axis=0, keepdims=True)
    else:
        g_all = jnp.mean(g_G, axis=0, keepdims=True)
    return w_e, g_all


# ---------------------------------------------------------------------------
# Pure-JAX reference (mirrors the PyTorch forward) for verification
# ---------------------------------------------------------------------------
def reference_forward(edge_features, edge_index, node_degrees, batch, heads,
                      tails, g_all_init, params, *, niters=2, training=True):
    E, F = edge_features.shape
    N = node_degrees.shape[0]
    B = heads.shape[0]
    row = edge_index[0]
    col = edge_index[1]
    nodes = jnp.arange(N, dtype=jnp.int32)
    is_head = (nodes == heads[batch]).astype(jnp.float32)[:, None]
    is_tail = (nodes == tails[batch]).astype(jnp.float32)[:, None]

    b_e = jnp.concatenate([edge_features, jnp.tile(g_all_init, (E, 1))], axis=1)
    b_v = None
    for _ in range(niters):
        h1 = jnp.maximum(b_e @ params["att_w1"].T + params["att_b1"], 0.0)
        z = h1 @ params["att_w2"].T + params["att_b2"]
        alpha = 1.0 / (1.0 + jnp.exp(-z))                       # (E, 1)
        m = jax.ops.segment_max(alpha[:, 0], col, num_segments=N)
        ex = jnp.exp(alpha[:, 0] - m[col])
        den = jax.ops.segment_sum(ex, col, num_segments=N)
        alpha_sm = (ex / den[col])[:, None]                     # scatter_softmax
        b_v = jax.ops.segment_sum(alpha_sm * b_e, col, num_segments=N)
        b_v = b_v / (1.0 + node_degrees.astype(jnp.float32))[:, None]
        r_v = jnp.concatenate([b_v, is_head, is_tail], axis=1)
        sender = r_v[row]
        receiver = r_v[col]
        b_e = (jnp.concatenate([sender, receiver, b_e], axis=1)
               @ params["upd_w"].T + params["upd_b"])
    g_max = jax.ops.segment_max(b_v, batch, num_segments=B)
    g_G = jnp.concatenate([g_max, b_v[heads], b_v[tails]], axis=1)
    if training:
        hgw = jnp.maximum(g_G @ params["gw_w1"].T + params["gw_b1"], 0.0)
        logits = hgw @ params["gw_w2"].T + params["gw_b2"]
        w_k = jax.nn.softmax(logits, axis=0)
        g_all = jnp.sum(w_k * g_G, axis=0, keepdims=True)
    else:
        g_all = jnp.mean(g_G, axis=0, keepdims=True)
    w_e = 1.0 / (1.0 + jnp.exp(-(b_e @ params["ew_w"].T + params["ew_b"])))
    return w_e, g_all


if __name__ == "__main__":
    key = jax.random.PRNGKey(0)
    ks = jax.random.split(key, 12)

    # small shapes consistent with the module
    F, G, B = 10, 6, 2
    H = F + G                       # hidden_dim = 16
    R = H + 2
    N = 16                          # 8 nodes per graph, 2 graphs
    E = 200                         # -> 2 in-kernel edge chunks of 128
    niters = 2

    edge_features = jax.random.normal(ks[0], (E, F), jnp.float32)
    g_all_init = jax.random.normal(ks[1], (1, G), jnp.float32)

    # edges stay within their own graph (nodes 0..7 / 8..15)
    row = jnp.concatenate([jax.random.randint(ks[2], (E // 2,), 0, 8),
                           jax.random.randint(ks[3], (E // 2,), 8, 16)])
    col = jnp.concatenate([jax.random.randint(ks[4], (E // 2,), 0, 8),
                           jax.random.randint(ks[5], (E // 2,), 8, 16)])
    edge_index = jnp.stack([row, col]).astype(jnp.int32)

    batch = jnp.concatenate([jnp.zeros(8, jnp.int32), jnp.ones(8, jnp.int32)])
    heads = jnp.array([0, 8], jnp.int32)
    tails = jnp.array([3, 11], jnp.int32)
    node_degrees = jax.ops.segment_sum(jnp.ones((E,), jnp.float32), col,
                                       num_segments=N)

    def lin(k, fan_out, fan_in):
        lim = 1.0 / math.sqrt(fan_in)
        kw, kb = jax.random.split(k)
        return (jax.random.uniform(kw, (fan_out, fan_in), jnp.float32, -lim, lim),
                jax.random.uniform(kb, (fan_out,), jnp.float32, -lim, lim))

    att_w1, att_b1 = lin(ks[6], H, H)
    att_w2, att_b2 = lin(ks[7], 1, H)
    upd_w, upd_b = lin(ks[8], H, 2 * R + H)
    gw_w1, gw_b1 = lin(ks[9], H, 3 * H)
    gw_w2, gw_b2 = lin(ks[10], 1, H)
    ew_w, ew_b = lin(ks[11], 1, H)

    params = dict(att_w1=att_w1, att_b1=att_b1, att_w2=att_w2, att_b2=att_b2,
                  upd_w=upd_w, upd_b=upd_b, gw_w1=gw_w1, gw_b1=gw_b1,
                  gw_w2=gw_w2, gw_b2=gw_b2, ew_w=ew_w, ew_b=ew_b)

    w_e, g_all = compass_weight_forward(
        edge_features, edge_index, node_degrees, batch, heads, tails,
        g_all_init, params, niters=niters, training=True, e_tile=128)
    jax.block_until_ready((w_e, g_all))

    w_e_ref, g_all_ref = reference_forward(
        edge_features, edge_index, node_degrees, batch, heads, tails,
        g_all_init, params, niters=niters, training=True)

    # tolerance accommodates TPU default matmul precision and the approximate
    # EUP reciprocals used in-kernel vs the XLA reference ops
    np.testing.assert_allclose(np.asarray(w_e), np.asarray(w_e_ref),
                               rtol=2e-2, atol=2e-2)
    np.testing.assert_allclose(np.asarray(g_all), np.asarray(g_all_ref),
                               rtol=2e-2, atol=2e-2)

    print("KERNEL_OK")
</pallas_src>

<mosaic_0001>
module attributes {stable_mosaic.version = 11 : i64} {
  func.func @_fused_mp_kernel(%arg0: i32, %arg1: memref<2x128xi32, #tpu.memory_space<vmem>>, %arg2: memref<256x1xi32, #tpu.memory_space<vmem>>, %arg3: memref<256x1xi32, #tpu.memory_space<vmem>>, %arg4: memref<256x128xf32, #tpu.memory_space<vmem>>, %arg5: memref<128x128xf32, #tpu.memory_space<vmem>>, %arg6: memref<1x128xf32, #tpu.memory_space<vmem>>, %arg7: memref<1x128xf32, #tpu.memory_space<vmem>>, %arg8: memref<1x1xf32, #tpu.memory_space<vmem>>, %arg9: memref<128x128xf32, #tpu.memory_space<vmem>>, %arg10: memref<128x128xf32, #tpu.memory_space<vmem>>, %arg11: memref<128x128xf32, #tpu.memory_space<vmem>>, %arg12: memref<1x128xf32, #tpu.memory_space<vmem>>, %arg13: memref<1x128xf32, #tpu.memory_space<vmem>>, %arg14: memref<1x1xf32, #tpu.memory_space<vmem>>, %arg15: memref<16x1xf32, #tpu.memory_space<vmem>>, %arg16: memref<16x128xf32, #tpu.memory_space<vmem>>, %arg17: memref<16x128xf32, #tpu.memory_space<vmem>>, %arg18: memref<256x1xf32, #tpu.memory_space<vmem>>, %arg19: memref<256x128xf32, #tpu.memory_space<vmem>>) attributes {dimension_semantics = [#tpu.dimension_semantics<arbitrary>], iteration_bounds = array<i64: 2>, scalar_prefetch = 0 : i64, scratch_operands = 1 : i64, tpu.core_type = #tpu.core_type<tc>, window_params = [{pipeline_mode = #tpu.pipeline_mode<synchronous>, transform_indices = @transform_0, window_bounds = array<i64: 2, 128>}, {pipeline_mode = #tpu.pipeline_mode<synchronous>, transform_indices = @transform_1, window_bounds = array<i64: 256, 1>}, {pipeline_mode = #tpu.pipeline_mode<synchronous>, transform_indices = @transform_2, window_bounds = array<i64: 256, 1>}, {pipeline_mode = #tpu.pipeline_mode<synchronous>, transform_indices = @transform_3, window_bounds = array<i64: 256, 128>}, {pipeline_mode = #tpu.pipeline_mode<synchronous>, transform_indices = @transform_4, window_bounds = array<i64: 128, 128>}, {pipeline_mode = #tpu.pipeline_mode<synchronous>, transform_indices = @transform_5, window_bounds = array<i64: 1, 128>}, {pipeline_mode = #tpu.pipeline_mode<synchronous>, transform_indices = @transform_6, window_bounds = array<i64: 1, 128>}, {pipeline_mode = #tpu.pipeline_mode<synchronous>, transform_indices = @transform_7, window_bounds = array<i64: 1, 1>}, {pipeline_mode = #tpu.pipeline_mode<synchronous>, transform_indices = @transform_8, window_bounds = array<i64: 128, 128>}, {pipeline_mode = #tpu.pipeline_mode<synchronous>, transform_indices = @transform_9, window_bounds = array<i64: 128, 128>}, {pipeline_mode = #tpu.pipeline_mode<synchronous>, transform_indices = @transform_10, window_bounds = array<i64: 128, 128>}, {pipeline_mode = #tpu.pipeline_mode<synchronous>, transform_indices = @transform_11, window_bounds = array<i64: 1, 128>}, {pipeline_mode = #tpu.pipeline_mode<synchronous>, transform_indices = @transform_12, window_bounds = array<i64: 1, 128>}, {pipeline_mode = #tpu.pipeline_mode<synchronous>, transform_indices = @transform_13, window_bounds = array<i64: 1, 1>}, {pipeline_mode = #tpu.pipeline_mode<synchronous>, transform_indices = @transform_14, window_bounds = array<i64: 16, 1>}, {pipeline_mode = #tpu.pipeline_mode<synchronous>, transform_indices = @transform_15, window_bounds = array<i64: 16, 128>}, {pipeline_mode = #tpu.pipeline_mode<synchronous>, transform_indices = @transform_16, window_bounds = array<i64: 16, 128>}, {pipeline_mode = #tpu.pipeline_mode<synchronous>, transform_indices = @transform_17, window_bounds = array<i64: 256, 1>}]} {
    %c0_i32 = arith.constant 0 : i32
    %0 = arith.cmpi eq, %arg0, %c0_i32 : i32
    %1 = arith.extui %0 : i1 to i32
    %c0_i32_0 = arith.constant 0 : i32
    %2 = arith.cmpi ne, %1, %c0_i32_0 : i32
    scf.if %2 {
      %c0_24 = arith.constant 0 : index
      %c0_25 = arith.constant 0 : index
      %36 = vector.load %arg4[%c0_24, %c0_25] : memref<256x128xf32, #tpu.memory_space<vmem>>, vector<256x128xf32>
      %c0_26 = arith.constant 0 : index
      %c0_27 = arith.constant 0 : index
      %37 = vector.load %arg19[%c0_26, %c0_27] : memref<256x128xf32, #tpu.memory_space<vmem>>, vector<256x128xf32>
      tpu.vector_store %arg19[%c0_26, %c0_27], %36 {strides = array<i32>} : memref<256x128xf32, #tpu.memory_space<vmem>>, vector<256x128xf32>,
    } else {
    }
    %3 = tpu.iota {dimensions = array<i32: 1>} : vector<1x128xi32>
    %c127_i32 = arith.constant 127 : i32
    %4 = vector.broadcast %c127_i32 : i32 to vector<1x128xi32>
    %5 = arith.cmpi eq, %3, %4 : vector<1x128xi32>
    %6 = arith.extui %5 : vector<1x128xi1> to vector<1x128xi32>
    %7 = arith.sitofp %6 : vector<1x128xi32> to vector<1x128xf32>
    %cst = arith.constant 0.000000e+00 : f32
    %8 = vector.broadcast %cst : f32 to vector<16x128xf32>
    %c0 = arith.constant 0 : index
    %c0_1 = arith.constant 0 : index
    %9 = vector.load %arg17[%c0, %c0_1] : memref<16x128xf32, #tpu.memory_space<vmem>>, vector<16x128xf32>
    tpu.vector_store %arg17[%c0, %c0_1], %8 {strides = array<i32>} : memref<16x128xf32, #tpu.memory_space<vmem>>, vector<16x128xf32>,
    %c0_i32_2 = arith.constant 0 : i32
    %c2_i32 = arith.constant 2 : i32
    %10 = arith.addi %c0_i32_2, %c2_i32 : i32
    %c1_i32 = arith.constant 1 : i32
    scf.for %arg20 = %c0_i32_2 to %10 step %c1_i32  : i32 {
      %c1_i32_24 = arith.constant 1 : i32
      %36 = arith.muli %arg20, %c1_i32_24 : i32
      %c0_i32_25 = arith.constant 0 : i32
      %37 = arith.addi %c0_i32_25, %36 : i32
      %c128_i32 = arith.constant 128 : i32
      %38 = arith.muli %37, %c128_i32 : i32
      %39 = tpu.assume_multiple %38, 128 : i32
      %40 = arith.index_cast %39 : i32 to index
      %c0_26 = arith.constant 0 : index
      %41 = vector.load %arg19[%40, %c0_26] : memref<256x128xf32, #tpu.memory_space<vmem>>, vector<128x128xf32>
      %c0_27 = arith.constant 0 : index
      %c0_28 = arith.constant 0 : index
      %42 = vector.load %arg5[%c0_27, %c0_28] : memref<128x128xf32, #tpu.memory_space<vmem>>, vector<128x128xf32>
      %cst_29 = arith.constant dense<0.000000e+00> : vector<128x128xf32>
      %43 = tpu.matmul %41, %42, %cst_29 {dimension_numbers = #tpu.dot_dimension_numbers<[1], [0], [0], [1], [0, 0, 1, 1], [], []>} : vector<128x128xf32>, vector<128x128xf32>, vector<128x128xf32> -> vector<128x128xf32>
      %c0_30 = arith.constant 0 : index
      %c0_31 = arith.constant 0 : index
      %44 = vector.load %arg6[%c0_30, %c0_31] : memref<1x128xf32, #tpu.memory_space<vmem>>, vector<1x128xf32>
      %45 = vector.broadcast %44 : vector<1x128xf32> to vector<128x128xf32>
      %46 = arith.addf %43, %45 : vector<128x128xf32>
      %cst_32 = arith.constant 0.000000e+00 : f32
      %47 = vector.broadcast %cst_32 : f32 to vector<128x128xf32>
      %48 = arith.maximumf %46, %47 : vector<128x128xf32>
      %c0_33 = arith.constant 0 : index
      %c0_34 = arith.constant 0 : index
      %49 = vector.load %arg7[%c0_33, %c0_34] : memref<1x128xf32, #tpu.memory_space<vmem>>, vector<1x128xf32>
      %50 = vector.broadcast %49 : vector<1x128xf32> to vector<128x128xf32>
      %51 = arith.mulf %48, %50 : vector<128x128xf32>
      %cst_35 = arith.constant dense<0.000000e+00> : vector<128xf32>
      %52 = vector.multi_reduction <add>, %51, %cst_35 [1] : vector<128x128xf32> to vector<128xf32>
      %53 = vector.shape_cast %52 : vector<128xf32> to vector<128x1xf32>
      %c0_36 = arith.constant 0 : index
      %c0_37 = arith.constant 0 : index
      %54 = vector.load %arg8[%c0_36, %c0_37] : memref<1x1xf32, #tpu.memory_space<vmem>>, vector<1x1xf32>
      %55 = vector.broadcast %54 : vector<1x1xf32> to vector<128x1xf32>
      %56 = arith.addf %53, %55 : vector<128x1xf32>
      %cst_38 = arith.constant 0.000000e+00 : f32
      %57 = vector.broadcast %cst_38 : f32 to vector<128x1xf32>
      %58 = arith.subf %57, %56 : vector<128x1xf32>
      %59 = math.exp %58 : vector<128x1xf32>
      %cst_39 = arith.constant 1.000000e+00 : f32
      %60 = vector.broadcast %cst_39 : f32 to vector<128x1xf32>
      %61 = arith.addf %60, %59 : vector<128x1xf32>
      %62 = tpu.reciprocal %61 {approx = true} : vector<128x1xf32> -> vector<128x1xf32>
      %63 = math.exp %62 : vector<128x1xf32>
      %64 = arith.index_cast %37 : i32 to index
      %c0_40 = arith.constant 0 : index
      %65 = vector.load %arg1[%64, %c0_40] : memref<2x128xi32, #tpu.memory_space<vmem>>, vector<1x128xi32>
      %66 = tpu.iota {dimensions = array<i32: 0>} : vector<16x128xi32>
      %67 = vector.broadcast %65 : vector<1x128xi32> to vector<16x128xi32>
      %68 = arith.cmpi eq, %66, %67 : vector<16x128xi32>
      %69 = arith.extui %68 : vector<16x128xi1> to vector<16x128xi32>
      %70 = arith.sitofp %69 : vector<16x128xi32> to vector<16x128xf32>
      %71 = vector.broadcast %63 : vector<128x1xf32> to vector<128x128xf32>
      %72 = arith.mulf %41, %71 : vector<128x128xf32>
      %73 = vector.broadcast %7 : vector<1x128xf32> to vector<128x128xf32>
      %74 = vector.broadcast %63 : vector<128x1xf32> to vector<128x128xf32>
      %75 = arith.mulf %73, %74 : vector<128x128xf32>
      %76 = arith.addf %72, %75 : vector<128x128xf32>
      %c0_41 = arith.constant 0 : index
      %c0_42 = arith.constant 0 : index
      %77 = vector.load %arg17[%c0_41, %c0_42] : memref<16x128xf32, #tpu.memory_space<vmem>>, vector<16x128xf32>
      %cst_43 = arith.constant dense<0.000000e+00> : vector<16x128xf32>
      %78 = tpu.matmul %70, %76, %cst_43 {dimension_numbers = #tpu.dot_dimension_numbers<[1], [0], [0], [1], [0, 0, 1, 1], [], []>} : vector<16x128xf32>, vector<128x128xf32>, vector<16x128xf32> -> vector<16x128xf32>
      %79 = arith.addf %77, %78 : vector<16x128xf32>
      %c0_44 = arith.constant 0 : index
      %c0_45 = arith.constant 0 : index
      %80 = vector.load %arg17[%c0_44, %c0_45] : memref<16x128xf32, #tpu.memory_space<vmem>>, vector<16x128xf32>
      tpu.vector_store %arg17[%c0_44, %c0_45], %79 {strides = array<i32>} : memref<16x128xf32, #tpu.memory_space<vmem>>, vector<16x128xf32>,
    }
    %c2_i32_3 = arith.constant 2 : i32
    %c0_4 = arith.constant 0 : index
    %c0_5 = arith.constant 0 : index
    %11 = vector.load %arg17[%c0_4, %c0_5] : memref<16x128xf32, #tpu.memory_space<vmem>>, vector<16x128xf32>
    %12 = vector.extract_strided_slice %11 {offsets = [0, 127], sizes = [16, 1], strides = [1, 1]} : vector<16x128xf32> to vector<16x1xf32>
    %cst_6 = arith.constant 0.000000e+00 : f32
    %13 = vector.broadcast %cst_6 : f32 to vector<16x1xf32>
    %14 = arith.cmpf ogt, %12, %13 : vector<16x1xf32>
    %cst_7 = arith.constant 1.000000e+00 : f32
    %15 = vector.broadcast %cst_7 : f32 to vector<16x1xf32>
    %16 = arith.select %14, %12, %15 : vector<16x1xi1>, vector<16x1xf32>
    %c0_8 = arith.constant 0 : index
    %c0_9 = arith.constant 0 : index
    %17 = vector.load %arg15[%c0_8, %c0_9] : memref<16x1xf32, #tpu.memory_space<vmem>>, vector<16x1xf32>
    %18 = arith.mulf %16, %17 : vector<16x1xf32>
    %19 = tpu.reciprocal %18 {approx = true} : vector<16x1xf32> -> vector<16x1xf32>
    %20 = vector.broadcast %19 : vector<16x1xf32> to vector<16x128xf32>
    %21 = arith.mulf %11, %20 : vector<16x128xf32>
    %c16_i32 = arith.constant 16 : i32
    %22 = vector.broadcast %c16_i32 : i32 to vector<1x128xi32>
    %23 = arith.cmpi slt, %3, %22 : vector<1x128xi32>
    %24 = arith.extui %23 : vector<1x128xi1> to vector<1x128xi32>
    %25 = arith.sitofp %24 : vector<1x128xi32> to vector<1x128xf32>
    %26 = vector.broadcast %25 : vector<1x128xf32> to vector<16x128xf32>
    %27 = arith.mulf %21, %26 : vector<16x128xf32>
    %c0_10 = arith.constant 0 : index
    %c0_11 = arith.constant 0 : index
    %28 = vector.load %arg16[%c0_10, %c0_11] : memref<16x128xf32, #tpu.memory_space<vmem>>, vector<16x128xf32>
    %29 = arith.addf %27, %28 : vector<16x128xf32>
    %c0_12 = arith.constant 0 : index
    %c0_13 = arith.constant 0 : index
    %30 = vector.load %arg17[%c0_12, %c0_13] : memref<16x128xf32, #tpu.memory_space<vmem>>, vector<16x128xf32>
    tpu.vector_store %arg17[%c0_12, %c0_13], %29 {strides = array<i32>} : memref<16x128xf32, #tpu.memory_space<vmem>>, vector<16x128xf32>,
    %c0_14 = arith.constant 0 : index
    %c0_15 = arith.constant 0 : index
    %31 = vector.load %arg9[%c0_14, %c0_15] : memref<128x128xf32, #tpu.memory_space<vmem>>, vector<128x128xf32>
    %cst_16 = arith.constant dense<0.000000e+00> : vector<16x128xf32>
    %32 = tpu.matmul %29, %31, %cst_16 {dimension_numbers = #tpu.dot_dimension_numbers<[1], [0], [0], [1], [0, 0, 1, 1], [], []>} : vector<16x128xf32>, vector<128x128xf32>, vector<16x128xf32> -> vector<16x128xf32>
    %c0_17 = arith.constant 0 : index
    %c0_18 = arith.constant 0 : index
    %33 = vector.load %arg10[%c0_17, %c0_18] : memref<128x128xf32, #tpu.memory_space<vmem>>, vector<128x128xf32>
    %cst_19 = arith.constant dense<0.000000e+00> : vector<16x128xf32>
    %34 = tpu.matmul %29, %33, %cst_19 {dimension_numbers = #tpu.dot_dimension_numbers<[1], [0], [0], [1], [0, 0, 1, 1], [], []>} : vector<16x128xf32>, vector<128x128xf32>, vector<16x128xf32> -> vector<16x128xf32>
    %c0_i32_20 = arith.constant 0 : i32
    %c2_i32_21 = arith.constant 2 : i32
    %35 = arith.addi %c0_i32_20, %c2_i32_21 : i32
    %c1_i32_22 = arith.constant 1 : i32
    scf.for %arg20 = %c0_i32_20 to %35 step %c1_i32_22  : i32 {
      %c1_i32_24 = arith.constant 1 : i32
      %36 = arith.muli %arg20, %c1_i32_24 : i32
      %c0_i32_25 = arith.constant 0 : i32
      %37 = arith.addi %c0_i32_25, %36 : i32
      %c128_i32 = arith.constant 128 : i32
      %38 = arith.muli %37, %c128_i32 : i32
      %39 = tpu.assume_multiple %38, 128 : i32
      %40 = arith.index_cast %39 : i32 to index
      %c0_26 = arith.constant 0 : index
      %41 = vector.load %arg19[%40, %c0_26] : memref<256x128xf32, #tpu.memory_space<vmem>>, vector<128x128xf32>
      %42 = tpu.iota {dimensions = array<i32: 1>} : vector<128x16xi32>
      %43 = arith.index_cast %39 : i32 to index
      %c0_27 = arith.constant 0 : index
      %44 = vector.load %arg2[%43, %c0_27] : memref<256x1xi32, #tpu.memory_space<vmem>>, vector<128x1xi32>
      %45 = vector.broadcast %44 : vector<128x1xi32> to vector<128x16xi32>
      %46 = arith.cmpi eq, %42, %45 : vector<128x16xi32>
      %47 = arith.extui %46 : vector<128x16xi1> to vector<128x16xi32>
      %48 = arith.sitofp %47 : vector<128x16xi32> to vector<128x16xf32>
      %49 = arith.index_cast %39 : i32 to index
      %c0_28 = arith.constant 0 : index
      %50 = vector.load %arg3[%49, %c0_28] : memref<256x1xi32, #tpu.memory_space<vmem>>, vector<128x1xi32>
      %51 = vector.broadcast %50 : vector<128x1xi32> to vector<128x16xi32>
      %52 = arith.cmpi eq, %42, %51 : vector<128x16xi32>
      %53 = arith.extui %52 : vector<128x16xi1> to vector<128x16xi32>
      %54 = arith.sitofp %53 : vector<128x16xi32> to vector<128x16xf32>
      %cst_29 = arith.constant dense<0.000000e+00> : vector<128x128xf32>
      %55 = tpu.matmul %48, %32, %cst_29 {dimension_numbers = #tpu.dot_dimension_numbers<[1], [0], [0], [1], [0, 0, 1, 1], [], []>} : vector<128x16xf32>, vector<16x128xf32>, vector<128x128xf32> -> vector<128x128xf32>
      %cst_30 = arith.constant dense<0.000000e+00> : vector<128x128xf32>
      %56 = tpu.matmul %54, %34, %cst_30 {dimension_numbers = #tpu.dot_dimension_numbers<[1], [0], [0], [1], [0, 0, 1, 1], [], []>} : vector<128x16xf32>, vector<16x128xf32>, vector<128x128xf32> -> vector<128x128xf32>
      %57 = arith.addf %55, %56 : vector<128x128xf32>
      %c0_31 = arith.constant 0 : index
      %c0_32 = arith.constant 0 : index
      %58 = vector.load %arg11[%c0_31, %c0_32] : memref<128x128xf32, #tpu.memory_space<vmem>>, vector<128x128xf32>
      %cst_33 = arith.constant dense<0.000000e+00> : vector<128x128xf32>
      %59 = tpu.matmul %41, %58, %cst_33 {dimension_numbers = #tpu.dot_dimension_numbers<[1], [0], [0], [1], [0, 0, 1, 1], [], []>} : vector<128x128xf32>, vector<128x128xf32>, vector<128x128xf32> -> vector<128x128xf32>
      %60 = arith.addf %57, %59 : vector<128x128xf32>
      %c0_34 = arith.constant 0 : index
      %c0_35 = arith.constant 0 : index
      %61 = vector.load %arg12[%c0_34, %c0_35] : memref<1x128xf32, #tpu.memory_space<vmem>>, vector<1x128xf32>
      %62 = vector.broadcast %61 : vector<1x128xf32> to vector<128x128xf32>
      %63 = arith.addf %60, %62 : vector<128x128xf32>
      %64 = arith.index_cast %39 : i32 to index
      %c0_36 = arith.constant 0 : index
      %65 = vector.load %arg19[%64, %c0_36] : memref<256x128xf32, #tpu.memory_space<vmem>>, vector<128x128xf32>
      tpu.vector_store %arg19[%64, %c0_36], %63 {strides = array<i32>} : memref<256x128xf32, #tpu.memory_space<vmem>>, vector<128x128xf32>,
      %c0_37 = arith.constant 0 : index
      %c0_38 = arith.constant 0 : index
      %66 = vector.load %arg13[%c0_37, %c0_38] : memref<1x128xf32, #tpu.memory_space<vmem>>, vector<1x128xf32>
      %67 = vector.broadcast %66 : vector<1x128xf32> to vector<128x128xf32>
      %68 = arith.mulf %63, %67 : vector<128x128xf32>
      %cst_39 = arith.constant dense<0.000000e+00> : vector<128xf32>
      %69 = vector.multi_reduction <add>, %68, %cst_39 [1] : vector<128x128xf32> to vector<128xf32>
      %70 = vector.shape_cast %69 : vector<128xf32> to vector<128x1xf32>
      %c0_40 = arith.constant 0 : index
      %c0_41 = arith.constant 0 : index
      %71 = vector.load %arg14[%c0_40, %c0_41] : memref<1x1xf32, #tpu.memory_space<vmem>>, vector<1x1xf32>
      %72 = vector.broadcast %71 : vector<1x1xf32> to vector<128x1xf32>
      %73 = arith.addf %70, %72 : vector<128x1xf32>
      %cst_42 = arith.constant 0.000000e+00 : f32
      %74 = vector.broadcast %cst_42 : f32 to vector<128x1xf32>
      %75 = arith.subf %74, %73 : vector<128x1xf32>
      %76 = math.exp %75 : vector<128x1xf32>
      %cst_43 = arith.constant 1.000000e+00 : f32
      %77 = vector.broadcast %cst_43 : f32 to vector<128x1xf32>
      %78 = arith.addf %77, %76 : vector<128x1xf32>
      %79 = tpu.reciprocal %78 {approx = true} : vector<128x1xf32> -> vector<128x1xf32>
      %80 = arith.index_cast %39 : i32 to index
      %c0_44 = arith.constant 0 : index
      %81 = vector.load %arg18[%80, %c0_44] : memref<256x1xf32, #tpu.memory_space<vmem>>, vector<128x1xf32>
      tpu.vector_store %arg18[%80, %c0_44], %79 {strides = array<i32>} : memref<256x1xf32, #tpu.memory_space<vmem>>, vector<128x1xf32>,
    }
    %c2_i32_23 = arith.constant 2 : i32
    return
  }
  func.func @transform_0(%arg0: i32) -> (i32, i32) {
    %c0_i32 = arith.constant 0 : i32
    %c0_i32_0 = arith.constant 0 : i32
    %c0_i32_1 = arith.constant 0 : i32
    return %c0_i32, %c0_i32_0 : i32, i32
  }
  func.func @transform_1(%arg0: i32) -> (i32, i32) {
    %c0_i32 = arith.constant 0 : i32
    %c0_i32_0 = arith.constant 0 : i32
    %c0_i32_1 = arith.constant 0 : i32
    return %c0_i32, %c0_i32_0 : i32, i32
  }
  func.func @transform_2(%arg0: i32) -> (i32, i32) {
    %c0_i32 = arith.constant 0 : i32
    %c0_i32_0 = arith.constant 0 : i32
    %c0_i32_1 = arith.constant 0 : i32
    return %c0_i32, %c0_i32_0 : i32, i32
  }
  func.func @transform_3(%arg0: i32) -> (i32, i32) {
    %c0_i32 = arith.constant 0 : i32
    %c0_i32_0 = arith.constant 0 : i32
    %c0_i32_1 = arith.constant 0 : i32
    return %c0_i32, %c0_i32_0 : i32, i32
  }
  func.func @transform_4(%arg0: i32) -> (i32, i32) {
    %c0_i32 = arith.constant 0 : i32
    %c0_i32_0 = arith.constant 0 : i32
    %c0_i32_1 = arith.constant 0 : i32
    return %c0_i32, %c0_i32_0 : i32, i32
  }
  func.func @transform_5(%arg0: i32) -> (i32, i32) {
    %c0_i32 = arith.constant 0 : i32
    %c0_i32_0 = arith.constant 0 : i32
    %c0_i32_1 = arith.constant 0 : i32
    return %c0_i32, %c0_i32_0 : i32, i32
  }
  func.func @transform_6(%arg0: i32) -> (i32, i32) {
    %c0_i32 = arith.constant 0 : i32
    %c0_i32_0 = arith.constant 0 : i32
    %c0_i32_1 = arith.constant 0 : i32
    return %c0_i32, %c0_i32_0 : i32, i32
  }
  func.func @transform_7(%arg0: i32) -> (i32, i32) {
    %c0_i32 = arith.constant 0 : i32
    %c0_i32_0 = arith.constant 0 : i32
    %c0_i32_1 = arith.constant 0 : i32
    return %c0_i32, %c0_i32_0 : i32, i32
  }
  func.func @transform_8(%arg0: i32) -> (i32, i32) {
    %c0_i32 = arith.constant 0 : i32
    %c0_i32_0 = arith.constant 0 : i32
    %c0_i32_1 = arith.constant 0 : i32
    return %c0_i32, %c0_i32_0 : i32, i32
  }
  func.func @transform_9(%arg0: i32) -> (i32, i32) {
    %c0_i32 = arith.constant 0 : i32
    %c0_i32_0 = arith.constant 0 : i32
    %c0_i32_1 = arith.constant 0 : i32
    return %c0_i32, %c0_i32_0 : i32, i32
  }
  func.func @transform_10(%arg0: i32) -> (i32, i32) {
    %c0_i32 = arith.constant 0 : i32
    %c0_i32_0 = arith.constant 0 : i32
    %c0_i32_1 = arith.constant 0 : i32
    return %c0_i32, %c0_i32_0 : i32, i32
  }
  func.func @transform_11(%arg0: i32) -> (i32, i32) {
    %c0_i32 = arith.constant 0 : i32
    %c0_i32_0 = arith.constant 0 : i32
    %c0_i32_1 = arith.constant 0 : i32
    return %c0_i32, %c0_i32_0 : i32, i32
  }
  func.func @transform_12(%arg0: i32) -> (i32, i32) {
    %c0_i32 = arith.constant 0 : i32
    %c0_i32_0 = arith.constant 0 : i32
    %c0_i32_1 = arith.constant 0 : i32
    return %c0_i32, %c0_i32_0 : i32, i32
  }
  func.func @transform_13(%arg0: i32) -> (i32, i32) {
    %c0_i32 = arith.constant 0 : i32
    %c0_i32_0 = arith.constant 0 : i32
    %c0_i32_1 = arith.constant 0 : i32
    return %c0_i32, %c0_i32_0 : i32, i32
  }
  func.func @transform_14(%arg0: i32) -> (i32, i32) {
    %c0_i32 = arith.constant 0 : i32
    %c0_i32_0 = arith.constant 0 : i32
    %c0_i32_1 = arith.constant 0 : i32
    return %c0_i32, %c0_i32_0 : i32, i32
  }
  func.func @transform_15(%arg0: i32) -> (i32, i32) {
    %c0_i32 = arith.constant 0 : i32
    %c0_i32_0 = arith.constant 0 : i32
    %c0_i32_1 = arith.constant 0 : i32
    return %c0_i32, %c0_i32_0 : i32, i32
  }
  func.func @transform_16(%arg0: i32) -> (i32, i32) {
    %c0_i32 = arith.constant 0 : i32
    %c0_i32_0 = arith.constant 0 : i32
    %c0_i32_1 = arith.constant 0 : i32
    return %c0_i32, %c0_i32_0 : i32, i32
  }
  func.func @transform_17(%arg0: i32) -> (i32, i32) {
    %c0_i32 = arith.constant 0 : i32
    %c0_i32_0 = arith.constant 0 : i32
    %c0_i32_1 = arith.constant 0 : i32
    return %c0_i32, %c0_i32_0 : i32, i32
  }
}

</mosaic_0001>

<llo_original>
// kernel: tpu_custom_call.1
$region0: #{tpu_custom_call.1}
  #allocation0 [shape = 'u32[]', space=smem, size = 0x4, offset = 0x4, fixed_abs, tag = 'smem constant byte address 0x4 - core index']
  #allocation1 [shape = 'u32[144,128]{1,0:T(1,128)}', space=vmem, size = 0x12000, scoped, tag = 'internal scratch']
  #allocation2 [shape = 'f32[256,128]{1,0:T(8,128)}', space=vmem, size = 0x20000, scoped, tag = 'scratch operand']
  #allocation3 [shape = 'f32[1,1]{1,0:T(1,128)S(1)}', space=vmem, size = 0x200, scoped, tag = 'scoped memory for tpu_custom_call.1']
  #allocation4 [shape = 'f32[1,1]{1,0:T(1,128)S(1)}', space=vmem, size = 0x200, scoped, tag = 'scoped memory for tpu_custom_call.1']
  %s0 = inlined_call_operand.vmem [shape: s32[2,128], index: 0, kind: input, shape index: {}]
  %s1 = inlined_call_operand.vmem [shape: s32[256,1], index: 1, kind: input, shape index: {}]
  %s2 = inlined_call_operand.vmem [shape: s32[256,1], index: 2, kind: input, shape index: {}]
  %s3 = inlined_call_operand.vmem [shape: f32[256,128], index: 3, kind: input, shape index: {}]
  %s4 = inlined_call_operand.vmem [shape: f32[128,128], index: 4, kind: input, shape index: {}]
  %s5 = inlined_call_operand.vmem [shape: f32[1,128], index: 5, kind: input, shape index: {}]
  %s6 = inlined_call_operand.vmem [shape: f32[1,128], index: 6, kind: input, shape index: {}]
  %s7 = inlined_call_operand.<no memory space> [shape: f32[1,1], index: 7, kind: input, shape index: {}]
  %s8 = inlined_call_operand.vmem [shape: f32[128,128], index: 8, kind: input, shape index: {}]
  %s9 = inlined_call_operand.hbm [shape: f32[128,128], index: 9, kind: input, shape index: {}]
  %s10 = inlined_call_operand.hbm [shape: f32[128,128], index: 10, kind: input, shape index: {}]
  %s11 = inlined_call_operand.vmem [shape: f32[1,128], index: 11, kind: input, shape index: {}]
  %s12 = inlined_call_operand.vmem [shape: f32[1,128], index: 12, kind: input, shape index: {}]
  %s13 = inlined_call_operand.<no memory space> [shape: f32[1,1], index: 13, kind: input, shape index: {}]
  %s14 = inlined_call_operand.vmem [shape: f32[16,1], index: 14, kind: input, shape index: {}]
  %s15 = inlined_call_operand.vmem [shape: f32[16,128], index: 15, kind: input, shape index: {}]
  %s16 = inlined_call_operand.hbm [shape: f32[16,128], index: 16, kind: output, shape index: {0}]
  %s17 = inlined_call_operand.vmem [shape: f32[256,1], index: 17, kind: output, shape index: {1}]
  %18 = xla_tuple %s16, %s17
  %s19 = sld [smem:[#allocation0]]
  $region131: #{tpu_custom_call.1} parent=0
    _
  %s21 = ssub.s32 1, %s19
  %s22 = scalar_select 0, %s21, %s19
  %v23 = vstv %s7
  %24 = vst [vmem:[#allocation3] sm:$0x1] %v23
  %v25 = vstv %s13
  %26 = vst [vmem:[#allocation4] sm:$0x1] %v25
  $region1: #{tpu_custom_call.1} parent=0
    #allocation5 [shape = 'u8[65536]{0}', space=vmem, size = 0x10000, scoped, tag = 'input window, operand 9, single buffered']
    #allocation6 [shape = 's32[2]{0}', space=sflag, size = 0x8, scoped, tag = 'scoped memory for tpu_custom_call.1']
    #allocation7 [shape = 's32[2]{0}', space=sflag, size = 0x8, scoped, tag = 'scoped memory for tpu_custom_call.1']
    #allocation8 [shape = 'u8[65536]{0}', space=vmem, size = 0x10000, scoped, tag = 'input window, operand 10, single buffered']
    #allocation9 [shape = 's32[1]{0}', space=sflag, size = 0x4, scoped, tag = 'scoped memory for tpu_custom_call.1']
    #allocation10 [shape = 'u8[8192]{0}', space=vmem, size = 0x2000, scoped, tag = 'output window, operand 0, single buffered']
    %27 = vsyncpa [#allocation6], 0
    %28 = vsyncpa [#allocation9], 0
    %29 = vsyncpa [#allocation7], 0
    loop: start=0, step=1, limit=4
    $region2: #{tpu_custom_call.1} parent=1 // loop_pre_header
      _
    $region3: #{tpu_custom_call.1} parent=1 // loop_header
      %s31 = sphi 0, %s35
      %p32 = scmp.ge.s32.totalorder %s31, 4
      %s39 = sphi 0, %s39
      %s41 = sphi 0, %s39
      %s42 = sphi 0, %s41
      %s56 = sphi 0, %s42
      %s60 = sphi 0, %s60
      %s62 = sphi 0, %s60
      %s63 = sphi 0, %s62
      %s77 = sphi 0, %s63
      %s81 = sphi 0, %s81
      %s83 = sphi 0, %s81
      %s84 = sphi 0, %s83
      %s98 = sphi 0, %s84
      %s102 = sphi 0, %s102
      %s104 = sphi 0, %s102
      %s105 = sphi 0, %s104
      %s119 = sphi 0, %s105
      %s123 = sphi 0, %s123
      %s125 = sphi 0, %s123
      %s126 = sphi 0, %s125
      %s140 = sphi 0, %s126
      %s144 = sphi 0, %s144
      %s146 = sphi 0, %s144
      %s147 = sphi 0, %s146
      %s161 = sphi 0, %s147
      %s165 = sphi 0, %s165
      %s167 = sphi 0, %s165
      %s168 = sphi 0, %s167
      %s182 = sphi 0, %s168
      %s186 = sphi 0, %s186
      %s188 = sphi 0, %s186
      %s189 = sphi 0, %s188
      %s203 = sphi 0, %s189
      %s207 = sphi 0, %s207
      %s209 = sphi 0, %s207
      %s210 = sphi 0, %s209
      %s224 = sphi 0, %s210
      %s228 = sphi 0, %s228
      %s230 = sphi 0, %s228
      %s231 = sphi 0, %s230
      %s245 = sphi 0, %s231
      %s249 = sphi 0, %s249
      %s251 = sphi 0, %s249
      %s252 = sphi 0, %s251
      %s266 = sphi 0, %s252
      %s270 = sphi 0, %s270
      %s272 = sphi 0, %s270
      %s273 = sphi 0, %s272
      %s287 = sphi 0, %s273
      %s291 = sphi 0, %s291
      %s293 = sphi 0, %s291
      %s294 = sphi 0, %s293
      %s308 = sphi 0, %s294
      %s312 = sphi 0, %s312
      %s314 = sphi 0, %s312
      %s315 = sphi 0, %s314
      %s329 = sphi 0, %s315
      %s333 = sphi 0, %s333
      %s335 = sphi 0, %s333
      %s336 = sphi 0, %s335
      %s350 = sphi 0, %s336
      %s354 = sphi 0, %s354
      %s356 = sphi 0, %s354
      %s357 = sphi 0, %s356
      %s371 = sphi 0, %s357
      %s375 = sphi 0, %s375
      %s377 = sphi 0, %s375
      %s378 = sphi 0, %s377
      %s392 = sphi 0, %s378
      %s396 = sphi 0, %s396
      %s398 = sphi 0, %s396
      %s399 = sphi 0, %s398
      %s413 = sphi 0, %s399
    $region4: #{tpu_custom_call.1} parent=1 // loop_header_branch
      %34 = sbr.rel (%p32) target = $region8
    $region5: #{tpu_custom_call.1} parent=1 // loop_body
      %s36 = ssub.s32 %s31, 1
      %s37 = ssub.s32 %s31, 2
      %s38 = sadd.s32 %s31, 1
      %s40 = sadd.s32 %s39, 1
      %p43 = scmp.eq.s32.totalorder %s31, 1
      %p44 = scmp.ne.s32.totalorder %s39, %s41
      %p45 = scmp.eq.s32.totalorder %s31, 0
      %p46 = por %p44, %p45
      %p47 = scmp.ne.s32.totalorder %s39, %s41
      %p48 = scmp.eq.s32.totalorder %s36, 1
      %p49 = por %p47, %p48
      %p50 = scmp.ne.s32.totalorder %s41, %s42
      %p51 = scmp.eq.s32.totalorder %s36, 0
      %p52 = por %p50, %p51
      %p53 = scmp.ne.s32.totalorder %s41, %s42
      %p54 = scmp.eq.s32.totalorder %s37, 1
      %p55 = por %p53, %p54
      %p57 = scmp.ne.s32.totalorder %s42, %s56
      %p58 = scmp.eq.s32.totalorder %s37, 0
      %p59 = por %p57, %p58
      %s61 = sadd.s32 %s60, 1
      %p64 = scmp.eq.s32.totalorder %s31, 1
      %p65 = scmp.ne.s32.totalorder %s60, %s62
      %p66 = scmp.eq.s32.totalorder %s31, 0
      %p67 = por %p65, %p66
      %p68 = scmp.ne.s32.totalorder %s60, %s62
      %p69 = scmp.eq.s32.totalorder %s36, 1
      %p70 = por %p68, %p69
      %p71 = scmp.ne.s32.totalorder %s62, %s63
      %p72 = scmp.eq.s32.totalorder %s36, 0
      %p73 = por %p71, %p72
      %p74 = scmp.ne.s32.totalorder %s62, %s63
      %p75 = scmp.eq.s32.totalorder %s37, 1
      %p76 = por %p74, %p75
      %p78 = scmp.ne.s32.totalorder %s63, %s77
      %p79 = scmp.eq.s32.totalorder %s37, 0
      %p80 = por %p78, %p79
      %s82 = sadd.s32 %s81, 1
      %p85 = scmp.eq.s32.totalorder %s31, 1
      %p86 = scmp.ne.s32.totalorder %s81, %s83
      %p87 = scmp.eq.s32.totalorder %s31, 0
      %p88 = por %p86, %p87
      %p89 = scmp.ne.s32.totalorder %s81, %s83
      %p90 = scmp.eq.s32.totalorder %s36, 1
      %p91 = por %p89, %p90
      %p92 = scmp.ne.s32.totalorder %s83, %s84
      %p93 = scmp.eq.s32.totalorder %s36, 0
      %p94 = por %p92, %p93
      %p95 = scmp.ne.s32.totalorder %s83, %s84
      %p96 = scmp.eq.s32.totalorder %s37, 1
      %p97 = por %p95, %p96
      %p99 = scmp.ne.s32.totalorder %s84, %s98
      %p100 = scmp.eq.s32.totalorder %s37, 0
      %p101 = por %p99, %p100
      %s103 = sadd.s32 %s102, 1
      %p106 = scmp.eq.s32.totalorder %s31, 1
      %p107 = scmp.ne.s32.totalorder %s102, %s104
      %p108 = scmp.eq.s32.totalorder %s31, 0
      %p109 = por %p107, %p108
      %p110 = scmp.ne.s32.totalorder %s102, %s104
      %p111 = scmp.eq.s32.totalorder %s36, 1
      %p112 = por %p110, %p111
      %p113 = scmp.ne.s32.totalorder %s104, %s105
      %p114 = scmp.eq.s32.totalorder %s36, 0
      %p115 = por %p113, %p114
      %p116 = scmp.ne.s32.totalorder %s104, %s105
      %p117 = scmp.eq.s32.totalorder %s37, 1
      %p118 = por %p116, %p117
      %p120 = scmp.ne.s32.totalorder %s105, %s119
      %p121 = scmp.eq.s32.totalorder %s37, 0
      %p122 = por %p120, %p121
      %s124 = sadd.s32 %s123, 1
      %p127 = scmp.eq.s32.totalorder %s31, 1
      %p128 = scmp.ne.s32.totalorder %s123, %s125
      %p129 = scmp.eq.s32.totalorder %s31, 0
      %p130 = por %p128, %p129
      %p131 = scmp.ne.s32.totalorder %s123, %s125
      %p132 = scmp.eq.s32.totalorder %s36, 1
      %p133 = por %p131, %p132
      %p134 = scmp.ne.s32.totalorder %s125, %s126
      %p135 = scmp.eq.s32.totalorder %s36, 0
      %p136 = por %p134, %p135
      %p137 = scmp.ne.s32.totalorder %s125, %s126
      %p138 = scmp.eq.s32.totalorder %s37, 1
      %p139 = por %p137, %p138
      %p141 = scmp.ne.s32.totalorder %s126, %s140
      %p142 = scmp.eq.s32.totalorder %s37, 0
      %p143 = por %p141, %p142
      %s145 = sadd.s32 %s144, 1
      %p148 = scmp.eq.s32.totalorder %s31, 1
      %p149 = scmp.ne.s32.totalorder %s144, %s146
      %p150 = scmp.eq.s32.totalorder %s31, 0
      %p151 = por %p149, %p150
      %p152 = scmp.ne.s32.totalorder %s144, %s146
      %p153 = scmp.eq.s32.totalorder %s36, 1
      %p154 = por %p152, %p153
      %p155 = scmp.ne.s32.totalorder %s146, %s147
      %p156 = scmp.eq.s32.totalorder %s36, 0
      %p157 = por %p155, %p156
      %p158 = scmp.ne.s32.totalorder %s146, %s147
      %p159 = scmp.eq.s32.totalorder %s37, 1
      %p160 = por %p158, %p159
      %p162 = scmp.ne.s32.totalorder %s147, %s161
      %p163 = scmp.eq.s32.totalorder %s37, 0
      %p164 = por %p162, %p163
      %s166 = sadd.s32 %s165, 1
      %p169 = scmp.eq.s32.totalorder %s31, 1
      %p170 = scmp.ne.s32.totalorder %s165, %s167
      %p171 = scmp.eq.s32.totalorder %s31, 0
      %p172 = por %p170, %p171
      %p173 = scmp.ne.s32.totalorder %s165, %s167
      %p174 = scmp.eq.s32.totalorder %s36, 1
      %p175 = por %p173, %p174
      %p176 = scmp.ne.s32.totalorder %s167, %s168
      %p177 = scmp.eq.s32.totalorder %s36, 0
      %p178 = por %p176, %p177
      %p179 = scmp.ne.s32.totalorder %s167, %s168
      %p180 = scmp.eq.s32.totalorder %s37, 1
      %p181 = por %p179, %p180
      %p183 = scmp.ne.s32.totalorder %s168, %s182
      %p184 = scmp.eq.s32.totalorder %s37, 0
      %p185 = por %p183, %p184
      %s187 = sadd.s32 %s186, 1
      %p190 = scmp.eq.s32.totalorder %s31, 1
      %p191 = scmp.ne.s32.totalorder %s186, %s188
      %p192 = scmp.eq.s32.totalorder %s31, 0
      %p193 = por %p191, %p192
      %p194 = scmp.ne.s32.totalorder %s186, %s188
      %p195 = scmp.eq.s32.totalorder %s36, 1
      %p196 = por %p194, %p195
      %p197 = scmp.ne.s32.totalorder %s188, %s189
      %p198 = scmp.eq.s32.totalorder %s36, 0
      %p199 = por %p197, %p198
      %p200 = scmp.ne.s32.totalorder %s188, %s189
      %p201 = scmp.eq.s32.totalorder %s37, 1
      %p202 = por %p200, %p201
      %p204 = scmp.ne.s32.totalorder %s189, %s203
      %p205 = scmp.eq.s32.totalorder %s37, 0
      %p206 = por %p204, %p205
      %s208 = sadd.s32 %s207, 1
      %p211 = scmp.eq.s32.totalorder %s31, 1
      %p212 = scmp.ne.s32.totalorder %s207, %s209
      %p213 = scmp.eq.s32.totalorder %s31, 0
      %p214 = por %p212, %p213
      %p215 = scmp.ne.s32.totalorder %s207, %s209
      %p216 = scmp.eq.s32.totalorder %s36, 1
      %p217 = por %p215, %p216
      %p218 = scmp.ne.s32.totalorder %s209, %s210
      %p219 = scmp.eq.s32.totalorder %s36, 0
      %p220 = por %p218, %p219
      %p221 = scmp.ne.s32.totalorder %s209, %s210
      %p222 = scmp.eq.s32.totalorder %s37, 1
      %p223 = por %p221, %p222
      %p225 = scmp.ne.s32.totalorder %s210, %s224
      %p226 = scmp.eq.s32.totalorder %s37, 0
      %p227 = por %p225, %p226
      %s229 = sadd.s32 %s228, 1
      %p232 = scmp.eq.s32.totalorder %s31, 1
      %p233 = scmp.ne.s32.totalorder %s228, %s230
      %p234 = scmp.eq.s32.totalorder %s31, 0
      %p235 = por %p233, %p234
      %p236 = scmp.ne.s32.totalorder %s228, %s230
      %p237 = scmp.eq.s32.totalorder %s36, 1
      %p238 = por %p236, %p237
      %p239 = scmp.ne.s32.totalorder %s230, %s231
      %p240 = scmp.eq.s32.totalorder %s36, 0
      %p241 = por %p239, %p240
      %p242 = scmp.ne.s32.totalorder %s230, %s231
      %p243 = scmp.eq.s32.totalorder %s37, 1
      %p244 = por %p242, %p243
      %p246 = scmp.ne.s32.totalorder %s231, %s245
      %p247 = scmp.eq.s32.totalorder %s37, 0
      %p248 = por %p246, %p247
      %s250 = sadd.s32 %s249, 1
      %p253 = scmp.eq.s32.totalorder %s31, 1
      %p254 = scmp.ne.s32.totalorder %s249, %s251
      %p255 = scmp.eq.s32.totalorder %s31, 0
      %p256 = por %p254, %p255
      %p257 = scmp.ne.s32.totalorder %s249, %s251
      %p258 = scmp.eq.s32.totalorder %s36, 1
      %p259 = por %p257, %p258
      %p260 = scmp.ne.s32.totalorder %s251, %s252
      %p261 = scmp.eq.s32.totalorder %s36, 0
      %p262 = por %p260, %p261
      %p263 = scmp.ne.s32.totalorder %s251, %s252
      %p264 = scmp.eq.s32.totalorder %s37, 1
      %p265 = por %p263, %p264
      %p267 = scmp.ne.s32.totalorder %s252, %s266
      %p268 = scmp.eq.s32.totalorder %s37, 0
      %p269 = por %p267, %p268
      %s271 = sadd.s32 %s270, 1
      %p274 = scmp.eq.s32.totalorder %s31, 1
      %p275 = scmp.ne.s32.totalorder %s270, %s272
      %p276 = scmp.eq.s32.totalorder %s31, 0
      %p277 = por %p275, %p276
      %p278 = scmp.ne.s32.totalorder %s270, %s272
      %p279 = scmp.eq.s32.totalorder %s36, 1
      %p280 = por %p278, %p279
      %p281 = scmp.ne.s32.totalorder %s272, %s273
      %p282 = scmp.eq.s32.totalorder %s36, 0
      %p283 = por %p281, %p282
      %p284 = scmp.ne.s32.totalorder %s272, %s273
      %p285 = scmp.eq.s32.totalorder %s37, 1
      %p286 = por %p284, %p285
      %p288 = scmp.ne.s32.totalorder %s273, %s287
      %p289 = scmp.eq.s32.totalorder %s37, 0
      %p290 = por %p288, %p289
      %s292 = sadd.s32 %s291, 1
      %p295 = scmp.eq.s32.totalorder %s31, 1
      %p296 = scmp.ne.s32.totalorder %s291, %s293
      %p297 = scmp.eq.s32.totalorder %s31, 0
      %p298 = por %p296, %p297
      %p299 = scmp.ne.s32.totalorder %s291, %s293
      %p300 = scmp.eq.s32.totalorder %s36, 1
      %p301 = por %p299, %p300
      %p302 = scmp.ne.s32.totalorder %s293, %s294
      %p303 = scmp.eq.s32.totalorder %s36, 0
      %p304 = por %p302, %p303
      %p305 = scmp.ne.s32.totalorder %s293, %s294
      %p306 = scmp.eq.s32.totalorder %s37, 1
      %p307 = por %p305, %p306
      %p309 = scmp.ne.s32.totalorder %s294, %s308
      %p310 = scmp.eq.s32.totalorder %s37, 0
      %p311 = por %p309, %p310
      %s313 = sadd.s32 %s312, 1
      %p316 = scmp.eq.s32.totalorder %s31, 1
      %p317 = scmp.ne.s32.totalorder %s312, %s314
      %p318 = scmp.eq.s32.totalorder %s31, 0
      %p319 = por %p317, %p318
      %p320 = scmp.ne.s32.totalorder %s312, %s314
      %p321 = scmp.eq.s32.totalorder %s36, 1
      %p322 = por %p320, %p321
      %p323 = scmp.ne.s32.totalorder %s314, %s315
      %p324 = scmp.eq.s32.totalorder %s36, 0
      %p325 = por %p323, %p324
      %p326 = scmp.ne.s32.totalorder %s314, %s315
      %p327 = scmp.eq.s32.totalorder %s37, 1
      %p328 = por %p326, %p327
      %p330 = scmp.ne.s32.totalorder %s315, %s329
      %p331 = scmp.eq.s32.totalorder %s37, 0
      %p332 = por %p330, %p331
      %s334 = sadd.s32 %s333, 1
      %p337 = scmp.eq.s32.totalorder %s31, 1
      %p338 = scmp.ne.s32.totalorder %s333, %s335
      %p339 = scmp.eq.s32.totalorder %s31, 0
      %p340 = por %p338, %p339
      %p341 = scmp.ne.s32.totalorder %s333, %s335
      %p342 = scmp.eq.s32.totalorder %s36, 1
      %p343 = por %p341, %p342
      %p344 = scmp.ne.s32.totalorder %s335, %s336
      %p345 = scmp.eq.s32.totalorder %s36, 0
      %p346 = por %p344, %p345
      %p347 = scmp.ne.s32.totalorder %s335, %s336
      %p348 = scmp.eq.s32.totalorder %s37, 1
      %p349 = por %p347, %p348
      %p351 = scmp.ne.s32.totalorder %s336, %s350
      %p352 = scmp.eq.s32.totalorder %s37, 0
      %p353 = por %p351, %p352
      %s355 = sadd.s32 %s354, 1
      %p358 = scmp.eq.s32.totalorder %s31, 1
      %p359 = scmp.ne.s32.totalorder %s354, %s356
      %p360 = scmp.eq.s32.totalorder %s31, 0
      %p361 = por %p359, %p360
      %p362 = scmp.ne.s32.totalorder %s354, %s356
      %p363 = scmp.eq.s32.totalorder %s36, 1
      %p364 = por %p362, %p363
      %p365 = scmp.ne.s32.totalorder %s356, %s357
      %p366 = scmp.eq.s32.totalorder %s36, 0
      %p367 = por %p365, %p366
      %p368 = scmp.ne.s32.totalorder %s356, %s357
      %p369 = scmp.eq.s32.totalorder %s37, 1
      %p370 = por %p368, %p369
      %p372 = scmp.ne.s32.totalorder %s357, %s371
      %p373 = scmp.eq.s32.totalorder %s37, 0
      %p374 = por %p372, %p373
      %s376 = sadd.s32 %s375, 1
      %p379 = scmp.eq.s32.totalorder %s31, 1
      %p380 = scmp.ne.s32.totalorder %s375, %s377
      %p381 = scmp.eq.s32.totalorder %s31, 0
      %p382 = por %p380, %p381
      %p383 = scmp.ne.s32.totalorder %s375, %s377
      %p384 = scmp.eq.s32.totalorder %s36, 1
      %p385 = por %p383, %p384
      %p386 = scmp.ne.s32.totalorder %s377, %s378
      %p387 = scmp.eq.s32.totalorder %s36, 0
      %p388 = por %p386, %p387
      %p389 = scmp.ne.s32.totalorder %s377, %s378
      %p390 = scmp.eq.s32.totalorder %s37, 1
      %p391 = por %p389, %p390
      %p393 = scmp.ne.s32.totalorder %s378, %s392
      %p394 = scmp.eq.s32.totalorder %s37, 0
      %p395 = por %p393, %p394
      %s397 = sadd.s32 %s396, 1
      %p400 = scmp.eq.s32.totalorder %s31, 1
      %p401 = scmp.ne.s32.totalorder %s396, %s398
      %p402 = scmp.eq.s32.totalorder %s31, 0
      %p403 = por %p401, %p402
      %p404 = scmp.ne.s32.totalorder %s396, %s398
      %p405 = scmp.eq.s32.totalorder %s36, 1
      %p406 = por %p404, %p405
      %p407 = scmp.ne.s32.totalorder %s398, %s399
      %p408 = scmp.eq.s32.totalorder %s36, 0
      %p409 = por %p407, %p408
      %p410 = scmp.ne.s32.totalorder %s398, %s399
      %p411 = scmp.eq.s32.totalorder %s37, 1
      %p412 = por %p410, %p411
      %p414 = scmp.ne.s32.totalorder %s399, %s413
      %p415 = scmp.eq.s32.totalorder %s37, 0
      %p416 = por %p414, %p415
      %p417 = scmp.le.s32.totalorder 1, %s31
      %p418 = scmp.lt.s32.totalorder %s31, 3
      %p419 = pnand %p417, %p418
      %p420 = pneg %p419
      // Predicated region
      $region9: #{tpu_custom_call.1} parent=5 // pred_check
        _
      $region10: #{tpu_custom_call.1} parent=5 // pred_check_branch
        %422 = sbr.rel (%p419) target = $region12
      $region11: #{tpu_custom_call.1} parent=5 // pred_region
        %s423 = ssub.s32 %s31, 1
        // Predicated region
        $region13: #{tpu_custom_call.1} parent=11 // pred_check
          %p424 = pneg %p52
        $region14: #{tpu_custom_call.1} parent=11 // pred_check_branch
          %426 = sbr.rel (%p424) target = $region16
        $region15: #{tpu_custom_call.1} parent=11 // pred_region
          _
        $region16: #{tpu_custom_call.1} parent=11 // pred_fallthru
          _
        // Predicated region
        $region17: #{tpu_custom_call.1} parent=11 // pred_check
          %p427 = pneg %p73
        $region18: #{tpu_custom_call.1} parent=11 // pred_check_branch
          %429 = sbr.rel (%p427) target = $region20
        $region19: #{tpu_custom_call.1} parent=11 // pred_region
          _
        $region20: #{tpu_custom_call.1} parent=11 // pred_fallthru
          _
        // Predicated region
        $region21: #{tpu_custom_call.1} parent=11 // pred_check
          %p430 = pneg %p94
        $region22: #{tpu_custom_call.1} parent=11 // pred_check_branch
          %432 = sbr.rel (%p430) target = $region24
        $region23: #{tpu_custom_call.1} parent=11 // pred_region
          _
        $region24: #{tpu_custom_call.1} parent=11 // pred_fallthru
          _
        // Predicated region
        $region25: #{tpu_custom_call.1} parent=11 // pred_check
          %p433 = pneg %p115
        $region26: #{tpu_custom_call.1} parent=11 // pred_check_branch
          %435 = sbr.rel (%p433) target = $region28
        $region27: #{tpu_custom_call.1} parent=11 // pred_region
          _
        $region28: #{tpu_custom_call.1} parent=11 // pred_fallthru
          _
        // Predicated region
        $region29: #{tpu_custom_call.1} parent=11 // pred_check
          %p436 = pneg %p136
        $region30: #{tpu_custom_call.1} parent=11 // pred_check_branch
          %438 = sbr.rel (%p436) target = $region32
        $region31: #{tpu_custom_call.1} parent=11 // pred_region
          _
        $region32: #{tpu_custom_call.1} parent=11 // pred_fallthru
          _
        // Predicated region
        $region33: #{tpu_custom_call.1} parent=11 // pred_check
          %p439 = pneg %p157
        $region34: #{tpu_custom_call.1} parent=11 // pred_check_branch
          %441 = sbr.rel (%p439) target = $region36
        $region35: #{tpu_custom_call.1} parent=11 // pred_region
          _
        $region36: #{tpu_custom_call.1} parent=11 // pred_fallthru
          _
        // Predicated region
        $region37: #{tpu_custom_call.1} parent=11 // pred_check
          %p442 = pneg %p178
        $region38: #{tpu_custom_call.1} parent=11 // pred_check_branch
          %444 = sbr.rel (%p442) target = $region40
        $region39: #{tpu_custom_call.1} parent=11 // pred_region
          _
        $region40: #{tpu_custom_call.1} parent=11 // pred_fallthru
          _
        // Predicated region
        $region41: #{tpu_custom_call.1} parent=11 // pred_check
          %p445 = pneg %p199
        $region42: #{tpu_custom_call.1} parent=11 // pred_check_branch
          %447 = sbr.rel (%p445) target = $region44
        $region43: #{tpu_custom_call.1} parent=11 // pred_region
          _
        $region44: #{tpu_custom_call.1} parent=11 // pred_fallthru
          _
        // Predicated region
        $region45: #{tpu_custom_call.1} parent=11 // pred_check
          %p448 = pneg %p220
        $region46: #{tpu_custom_call.1} parent=11 // pred_check_branch
          %450 = sbr.rel (%p448) target = $region48
        $region47: #{tpu_custom_call.1} parent=11 // pred_region
          _
        $region48: #{tpu_custom_call.1} parent=11 // pred_fallthru
          _
        // Predicated region
        $region49: #{tpu_custom_call.1} parent=11 // pred_check
          %p451 = pneg %p241
        $region50: #{tpu_custom_call.1} parent=11 // pred_check_branch
          %453 = sbr.rel (%p451) target = $region52
        $region51: #{tpu_custom_call.1} parent=11 // pred_region
          %s455 = ssub.s32 2048, 2048
          %456 = vsyncadd [#allocation6], %s455
          %s457 = sshll.u32 [#allocation5], 4
          %s458 = int_to_ptr.vmem [resolvable:$true] %s457
          %463 = dma.hbm_to_vmem [thread:$0]  %s9, 2048, %s458, [#allocation6], 128, 128, 8
        $region52: #{tpu_custom_call.1} parent=11 // pred_fallthru
          _
        // Predicated region
        $region53: #{tpu_custom_call.1} parent=11 // pred_check
          %p464 = pneg %p262
        $region54: #{tpu_custom_call.1} parent=11 // pred_check_branch
          %466 = sbr.rel (%p464) target = $region56
        $region55: #{tpu_custom_call.1} parent=11 // pred_region
          %s468 = ssub.s32 2048, 2048
          %469 = vsyncadd [#allocation9], %s468
          %s470 = sshll.u32 [#allocation8], 4
          %s471 = int_to_ptr.vmem [resolvable:$true] %s470
          %476 = dma.hbm_to_vmem [thread:$0]  %s10, 2048, %s471, [#allocation9], 128, 128, 8
        $region56: #{tpu_custom_call.1} parent=11 // pred_fallthru
          _
        // Predicated region
        $region57: #{tpu_custom_call.1} parent=11 // pred_check
          %p477 = pneg %p283
        $region58: #{tpu_custom_call.1} parent=11 // pred_check_branch
          %479 = sbr.rel (%p477) target = $region60
        $region59: #{tpu_custom_call.1} parent=11 // pred_region
          _
        $region60: #{tpu_custom_call.1} parent=11 // pred_fallthru
          _
        // Predicated region
        $region61: #{tpu_custom_call.1} parent=11 // pred_check
          %p480 = pneg %p304
        $region62: #{tpu_custom_call.1} parent=11 // pred_check_branch
          %482 = sbr.rel (%p480) target = $region64
        $region63: #{tpu_custom_call.1} parent=11 // pred_region
          _
        $region64: #{tpu_custom_call.1} parent=11 // pred_fallthru
          _
        // Predicated region
        $region65: #{tpu_custom_call.1} parent=11 // pred_check
          %p483 = pneg %p325
        $region66: #{tpu_custom_call.1} parent=11 // pred_check_branch
          %485 = sbr.rel (%p483) target = $region68
        $region67: #{tpu_custom_call.1} parent=11 // pred_region
          _
        $region68: #{tpu_custom_call.1} parent=11 // pred_fallthru
          _
        // Predicated region
        $region69: #{tpu_custom_call.1} parent=11 // pred_check
          %p486 = pneg %p346
        $region70: #{tpu_custom_call.1} parent=11 // pred_check_branch
          %488 = sbr.rel (%p486) target = $region72
        $region71: #{tpu_custom_call.1} parent=11 // pred_region
          _
        $region72: #{tpu_custom_call.1} parent=11 // pred_fallthru
          _
        // Predicated region
        $region73: #{tpu_custom_call.1} parent=11 // pred_check
          %p489 = pneg %p367
        $region74: #{tpu_custom_call.1} parent=11 // pred_check_branch
          %491 = sbr.rel (%p489) target = $region76
        $region75: #{tpu_custom_call.1} parent=11 // pred_region
          _
        $region76: #{tpu_custom_call.1} parent=11 // pred_fallthru
          _
      $region12: #{tpu_custom_call.1} parent=5 // pred_fallthru
        _
      %p492 = scmp.lt.s32.totalorder %s31, 2
      // Predicated region
      $region77: #{tpu_custom_call.1} parent=5 // pred_check
        %p493 = pneg %p492
      $region78: #{tpu_custom_call.1} parent=5 // pred_check_branch
        %495 = sbr.rel (%p493) target = $region80
      $region79: #{tpu_custom_call.1} parent=5 // pred_region
        _
      $region80: #{tpu_custom_call.1} parent=5 // pred_fallthru
        _
      %p496 = scmp.le.s32.totalorder 1, %s31
      %p497 = scmp.lt.s32.totalorder %s31, 3
      %p498 = pnand %p496, %p497
      %p499 = pneg %p498
      // Predicated region
      $region81: #{tpu_custom_call.1} parent=5 // pred_check
        _
      $region82: #{tpu_custom_call.1} parent=5 // pred_check_branch
        %501 = sbr.rel (%p498) target = $region84
      $region83: #{tpu_custom_call.1} parent=5 // pred_region
        %s502 = ssub.s32 %s31, 1
        // Predicated region
        $region85: #{tpu_custom_call.1} parent=83 // pred_check
          %p503 = pneg %p241
        $region86: #{tpu_custom_call.1} parent=83 // pred_check_branch
          %505 = sbr.rel (%p503) target = $region88
        $region87: #{tpu_custom_call.1} parent=83 // pred_region
          %506 = dma.done [#allocation6], 2048
        $region88: #{tpu_custom_call.1} parent=83 // pred_fallthru
          _
        // Predicated region
        $region89: #{tpu_custom_call.1} parent=83 // pred_check
          %p507 = pneg %p262
        $region90: #{tpu_custom_call.1} parent=83 // pred_check_branch
          %509 = sbr.rel (%p507) target = $region92
        $region91: #{tpu_custom_call.1} parent=83 // pred_region
          %510 = dma.done [#allocation9], 2048
        $region92: #{tpu_custom_call.1} parent=83 // pred_fallthru
          _
        %p511 = pneg %p52
        %p512 = pneg %p49
        %p513 = pneg %p73
        %p514 = pneg %p70
        %p515 = pneg %p94
        %p516 = pneg %p91
        %p517 = pneg %p115
        %p518 = pneg %p112
        %p519 = pneg %p136
        %p520 = pneg %p133
        %p521 = pneg %p157
        %p522 = pneg %p154
        %p523 = pneg %p178
        %p524 = pneg %p175
        %p525 = pneg %p199
        %p526 = pneg %p196
        %p527 = pneg %p220
        %p528 = pneg %p217
        %p529 = pneg %p241
        %p530 = pneg %p238
        %p531 = pneg %p262
        %p532 = pneg %p259
        %p533 = pneg %p283
        %p534 = pneg %p280
        %p535 = pneg %p304
        %p536 = pneg %p301
        %p537 = pneg %p325
        %p538 = pneg %p322
        %p539 = pneg %p346
        %p540 = pneg %p343
        %p541 = pneg %p367
        %p542 = pneg %p364
        %p543 = pneg %p388
        %p544 = pneg %p385
        %p545 = pneg %p409
        %p546 = pneg %p406
        %p547 = scmp.eq.s32.totalorder %s36, 0
        // Predicated region
        $region93: #{tpu_custom_call.1} parent=83 // pred_check
          %p548 = pneg %p547
        $region94: #{tpu_custom_call.1} parent=83 // pred_check_branch
          %550 = sbr.rel (%p548) target = $region96
        $region95: #{tpu_custom_call.1} parent=83 // pred_region
          %v551 = vld [vmem:[%s3] sm:$0xff]
          %v552 = vld [vmem:[%s3 + $0x8] sm:$0xff]
          %v553 = vld [vmem:[%s3 + $0x10] sm:$0xff]
          %v554 = vld [vmem:[%s3 + $0x18] sm:$0xff]
          %v555 = vld [vmem:[%s3 + $0x20] sm:$0xff]
          %v556 = vld [vmem:[%s3 + $0x28] sm:$0xff]
          %v557 = vld [vmem:[%s3 + $0x30] sm:$0xff]
          %v558 = vld [vmem:[%s3 + $0x38] sm:$0xff]
          %v559 = vld [vmem:[%s3 + $0x40] sm:$0xff]
          %v560 = vld [vmem:[%s3 + $0x48] sm:$0xff]
          %v561 = vld [vmem:[%s3 + $0x50] sm:$0xff]
          %v562 = vld [vmem:[%s3 + $0x58] sm:$0xff]
          %v563 = vld [vmem:[%s3 + $0x60] sm:$0xff]
          %v564 = vld [vmem:[%s3 + $0x68] sm:$0xff]
          %v565 = vld [vmem:[%s3 + $0x70] sm:$0xff]
          %v566 = vld [vmem:[%s3 + $0x78] sm:$0xff]
          %v567 = vld [vmem:[%s3 + $0x80] sm:$0xff]
          %v568 = vld [vmem:[%s3 + $0x88] sm:$0xff]
          %v569 = vld [vmem:[%s3 + $0x90] sm:$0xff]
          %v570 = vld [vmem:[%s3 + $0x98] sm:$0xff]
          %v571 = vld [vmem:[%s3 + $0xa0] sm:$0xff]
          %v572 = vld [vmem:[%s3 + $0xa8] sm:$0xff]
          %v573 = vld [vmem:[%s3 + $0xb0] sm:$0xff]
          %v574 = vld [vmem:[%s3 + $0xb8] sm:$0xff]
          %v575 = vld [vmem:[%s3 + $0xc0] sm:$0xff]
          %v576 = vld [vmem:[%s3 + $0xc8] sm:$0xff]
          %v577 = vld [vmem:[%s3 + $0xd0] sm:$0xff]
          %v578 = vld [vmem:[%s3 + $0xd8] sm:$0xff]
          %v579 = vld [vmem:[%s3 + $0xe0] sm:$0xff]
          %v580 = vld [vmem:[%s3 + $0xe8] sm:$0xff]
          %v581 = vld [vmem:[%s3 + $0xf0] sm:$0xff]
          %v582 = vld [vmem:[%s3 + $0xf8] sm:$0xff]
          %583 = vst [vmem:[#allocation2] sm:$0xff] %v551
          %584 = vst [vmem:[#allocation2 + $0x8] sm:$0xff] %v552
          %585 = vst [vmem:[#allocation2 + $0x10] sm:$0xff] %v553
          %586 = vst [vmem:[#allocation2 + $0x18] sm:$0xff] %v554
          %587 = vst [vmem:[#allocation2 + $0x20] sm:$0xff] %v555
          %588 = vst [vmem:[#allocation2 + $0x28] sm:$0xff] %v556
          %589 = vst [vmem:[#allocation2 + $0x30] sm:$0xff] %v557
          %590 = vst [vmem:[#allocation2 + $0x38] sm:$0xff] %v558
          %591 = vst [vmem:[#allocation2 + $0x40] sm:$0xff] %v559
          %592 = vst [vmem:[#allocation2 + $0x48] sm:$0xff] %v560
          %593 = vst [vmem:[#allocation2 + $0x50] sm:$0xff] %v561
          %594 = vst [vmem:[#allocation2 + $0x58] sm:$0xff] %v562
          %595 = vst [vmem:[#allocation2 + $0x60] sm:$0xff] %v563
          %596 = vst [vmem:[#allocation2 + $0x68] sm:$0xff] %v564
          %597 = vst [vmem:[#allocation2 + $0x70] sm:$0xff] %v565
          %598 = vst [vmem:[#allocation2 + $0x78] sm:$0xff] %v566
          %599 = vst [vmem:[#allocation2 + $0x80] sm:$0xff] %v567
          %600 = vst [vmem:[#allocation2 + $0x88] sm:$0xff] %v568
          %601 = vst [vmem:[#allocation2 + $0x90] sm:$0xff] %v569
          %602 = vst [vmem:[#allocation2 + $0x98] sm:$0xff] %v570
          %603 = vst [vmem:[#allocation2 + $0xa0] sm:$0xff] %v571
          %604 = vst [vmem:[#allocation2 + $0xa8] sm:$0xff] %v572
          %605 = vst [vmem:[#allocation2 + $0xb0] sm:$0xff] %v573
          %606 = vst [vmem:[#allocation2 + $0xb8] sm:$0xff] %v574
          %607 = vst [vmem:[#allocation2 + $0xc0] sm:$0xff] %v575
          %608 = vst [vmem:[#allocation2 + $0xc8] sm:$0xff] %v576
          %609 = vst [vmem:[#allocation2 + $0xd0] sm:$0xff] %v577
          %610 = vst [vmem:[#allocation2 + $0xd8] sm:$0xff] %v578
          %611 = vst [vmem:[#allocation2 + $0xe0] sm:$0xff] %v579
          %612 = vst [vmem:[#allocation2 + $0xe8] sm:$0xff] %v580
          %613 = vst [vmem:[#allocation2 + $0xf0] sm:$0xff] %v581
          %614 = vst [vmem:[#allocation2 + $0xf8] sm:$0xff] %v582
        $region96: #{tpu_custom_call.1} parent=83 // pred_fallthru
          _
        %v615 = vlaneseq
        %v616 = vand.u32 %v615, 127
        %vm617 = vcmp.eq.s32.totalorder %v616, 127
        %v618 = vsel %vm617, 1, 0
        %v619 = vcvt.s32.f32 %v618
        %620 = vst [vmem:[#allocation10] sm:$0xff] 0.0
        %621 = vst [vmem:[#allocation10 + $0x8] sm:$0xff] 0.0
        loop: start=0, step=1, limit=2
        $region97: #{tpu_custom_call.1} parent=83 // loop_pre_header
          _
        $region98: #{tpu_custom_call.1} parent=83 // loop_header
          %s623 = sphi 0, %s627
          %p624 = scmp.ge.s32.totalorder %s623, 2
        $region99: #{tpu_custom_call.1} parent=83 // loop_header_branch
          %626 = sbr.rel (%p624) target = $region103
        $region100: #{tpu_custom_call.1} parent=83 // loop_body
          %s628 = smul.u32 %s623, 128
          %s629 = scalar_lea.vmem [#allocation2], %s628
          %v630 = vld [vmem:[%s629] sm:$0xff]
          %v631 = vld [vmem:[%s629 + $0x8] sm:$0xff]
          %v632 = vld [vmem:[%s629 + $0x10] sm:$0xff]
          %v633 = vld [vmem:[%s629 + $0x18] sm:$0xff]
          %v634 = vld [vmem:[%s629 + $0x20] sm:$0xff]
          %v635 = vld [vmem:[%s629 + $0x28] sm:$0xff]
          %v636 = vld [vmem:[%s629 + $0x30] sm:$0xff]
          %v637 = vld [vmem:[%s629 + $0x38] sm:$0xff]
          %v638 = vld [vmem:[%s629 + $0x40] sm:$0xff]
          %v639 = vld [vmem:[%s629 + $0x48] sm:$0xff]
          %v640 = vld [vmem:[%s629 + $0x50] sm:$0xff]
          %v641 = vld [vmem:[%s629 + $0x58] sm:$0xff]
          %v642 = vld [vmem:[%s629 + $0x60] sm:$0xff]
          %v643 = vld [vmem:[%s629 + $0x68] sm:$0xff]
          %v644 = vld [vmem:[%s629 + $0x70] sm:$0xff]
          %v645 = vld [vmem:[%s629 + $0x78] sm:$0xff]
          %v646 = vld [vmem:[%s4] sm:$0xff]
          %v647 = vld [vmem:[%s4 + $0x8] sm:$0xff]
          %v648 = vld [vmem:[%s4 + $0x10] sm:$0xff]
          %v649 = vld [vmem:[%s4 + $0x18] sm:$0xff]
          %v650 = vld [vmem:[%s4 + $0x20] sm:$0xff]
          %v651 = vld [vmem:[%s4 + $0x28] sm:$0xff]
          %v652 = vld [vmem:[%s4 + $0x30] sm:$0xff]
          %v653 = vld [vmem:[%s4 + $0x38] sm:$0xff]
          %v654 = vld [vmem:[%s4 + $0x40] sm:$0xff]
          %v655 = vld [vmem:[%s4 + $0x48] sm:$0xff]
          %v656 = vld [vmem:[%s4 + $0x50] sm:$0xff]
          %v657 = vld [vmem:[%s4 + $0x58] sm:$0xff]
          %v658 = vld [vmem:[%s4 + $0x60] sm:$0xff]
          %v659 = vld [vmem:[%s4 + $0x68] sm:$0xff]
          %v660 = vld [vmem:[%s4 + $0x70] sm:$0xff]
          %v661 = vld [vmem:[%s4 + $0x78] sm:$0xff]
          %v662 = vld [vmem:[%s5] sm:$0x1]
          %v664 = vlaneseq
          %v665 = vshrl.u32 %v664, 7
          %v666 = vsub.s32 0, %v665
          %v667 = vrot.slane %v662, %v666
          %669 = vmatprep.subr.mxu0 0.0
          %670 = vmatpush1.msra.mxu0 %v646
          %671 = vmatprep.subr.mxu0 0.0
          %672 = vmatpush1.msra.mxu0 %v647
          %673 = vmatprep.subr.mxu0 0.0
          %674 = vmatpush1.msra.mxu0 %v648
          %675 = vmatprep.subr.mxu0 0.0
          %676 = vmatpush1.msra.mxu0 %v649
          %677 = vmatprep.subr.mxu0 0.0
          %678 = vmatpush1.msra.mxu0 %v650
          %679 = vmatprep.subr.mxu0 0.0
          %680 = vmatpush1.msra.mxu0 %v651
          %681 = vmatprep.subr.mxu0 0.0
          %682 = vmatpush1.msra.mxu0 %v652
          %683 = vmatprep.subr.mxu0 0.0
          %684 = vmatpush1.msra.mxu0 %v653
          %685 = vmatprep.subr.mxu0 0.0
          %686 = vmatpush1.msra.mxu0 %v654
          %687 = vmatprep.subr.mxu0 0.0
          %688 = vmatpush1.msra.mxu0 %v655
          %689 = vmatprep.subr.mxu0 0.0
          %690 = vmatpush1.msra.mxu0 %v656
          %691 = vmatprep.subr.mxu0 0.0
          %692 = vmatpush1.msra.mxu0 %v657
          %693 = vmatprep.subr.mxu0 0.0
          %694 = vmatpush1.msra.mxu0 %v658
          %695 = vmatprep.subr.mxu0 0.0
          %696 = vmatpush1.msra.mxu0 %v659
          %697 = vmatprep.subr.mxu0 0.0
          %698 = vmatpush1.msra.mxu0 %v660
          %699 = vmatprep.subr.mxu0 0.0
          %700 = vmatpush1.msra.mxu0 %v661
          %701 = vmatprep.subr.mxu0 0.0
          %702 = vmatpush1.msra.mxu0 0.0
          %703 = vmatprep.subr.mxu0 0.0
          %704 = vmatpush1.msra.mxu0 0.0
          %705 = vmatprep.subr.mxu0 0.0
          %706 = vmatpush1.msra.mxu0 0.0
          %707 = vmatprep.subr.mxu0 0.0
          %708 = vmatpush1.msra.mxu0 0.0
          %709 = vmatprep.subr.mxu0 0.0
          %710 = vmatpush1.msra.mxu0 0.0
          %711 = vmatprep.subr.mxu0 0.0
          %712 = vmatpush1.msra.mxu0 0.0
          %713 = vmatprep.subr.mxu0 0.0
          %714 = vmatpush1.msra.mxu0 0.0
          %715 = vmatprep.subr.mxu0 0.0
          %716 = vmatpush1.msra.mxu0 0.0
          %717 = vmatprep.subr.mxu0 0.0
          %718 = vmatpush1.msra.mxu0 0.0
          %719 = vmatprep.subr.mxu0 0.0
          %720 = vmatpush1.msra.mxu0 0.0
          %721 = vmatprep.subr.mxu0 0.0
          %722 = vmatpush1.msra.mxu0 0.0
          %723 = vmatprep.subr.mxu0 0.0
          %724 = vmatpush1.msra.mxu0 0.0
          %725 = vmatprep.subr.mxu0 0.0
          %726 = vmatpush1.msra.mxu0 0.0
          %727 = vmatprep.subr.mxu0 0.0
          %728 = vmatpush1.msra.mxu0 0.0
          %729 = vmatprep.subr.mxu0 0.0
          %730 = vmatpush1.msra.mxu0 0.0
          %731 = vmatprep.subr.mxu0 0.0
          %732 = vmatpush1.msra.mxu0 0.0
          %733 = vmatprep.mubr.f32.mxu0 0.0
          %734 = vmatmul.mubr.f32.gmra.mrb[0].mxu0 %v630
          %v735 = vpop.f32.mrb[0].mxu0
          %v736 = vadd.f32 %v667, %v735
          %v737 = vpop.f32.mrb[0].mxu0
          %738 = vmatprep.mubr.f32.mxu0 0.0
          %739 = vmatmul.mubr.f32.gmra.mrb[0].mxu0 %v631
          %v740 = vpop.f32.mrb[0].mxu0
          %v741 = vadd.f32 %v667, %v740
          %v742 = vpop.f32.mrb[0].mxu0
          %743 = vmatprep.mubr.f32.mxu0 0.0
          %744 = vmatmul.mubr.f32.gmra.mrb[0].mxu0 %v632
          %v745 = vpop.f32.mrb[0].mxu0
          %v746 = vadd.f32 %v667, %v745
          %v747 = vpop.f32.mrb[0].mxu0
          %748 = vmatprep.mubr.f32.mxu0 0.0
          %749 = vmatmul.mubr.f32.gmra.mrb[0].mxu0 %v633
          %v750 = vpop.f32.mrb[0].mxu0
          %v751 = vadd.f32 %v667, %v750
          %v752 = vpop.f32.mrb[0].mxu0
          %753 = vmatprep.mubr.f32.mxu0 0.0
          %754 = vmatmul.mubr.f32.gmra.mrb[0].mxu0 %v634
          %v755 = vpop.f32.mrb[0].mxu0
          %v756 = vadd.f32 %v667, %v755
          %v757 = vpop.f32.mrb[0].mxu0
          %758 = vmatprep.mubr.f32.mxu0 0.0
          %759 = vmatmul.mubr.f32.gmra.mrb[0].mxu0 %v635
          %v760 = vpop.f32.mrb[0].mxu0
          %v761 = vadd.f32 %v667, %v760
          %v762 = vpop.f32.mrb[0].mxu0
          %763 = vmatprep.mubr.f32.mxu0 0.0
          %764 = vmatmul.mubr.f32.gmra.mrb[0].mxu0 %v636
          %v765 = vpop.f32.mrb[0].mxu0
          %v766 = vadd.f32 %v667, %v765
          %v767 = vpop.f32.mrb[0].mxu0
          %768 = vmatprep.mubr.f32.mxu0 0.0
          %769 = vmatmul.mubr.f32.gmra.mrb[0].mxu0 %v637
          %v770 = vpop.f32.mrb[0].mxu0
          %v771 = vadd.f32 %v667, %v770
          %v772 = vpop.f32.mrb[0].mxu0
          %773 = vmatprep.mubr.f32.mxu0 0.0
          %774 = vmatmul.mubr.f32.gmra.mrb[0].mxu0 %v638
          %v775 = vpop.f32.mrb[0].mxu0
          %v776 = vadd.f32 %v667, %v775
          %v777 = vpop.f32.mrb[0].mxu0
          %778 = vmatprep.mubr.f32.mxu0 0.0
          %779 = vmatmul.mubr.f32.gmra.mrb[0].mxu0 %v639
          %v780 = vpop.f32.mrb[0].mxu0
          %v781 = vadd.f32 %v667, %v780
          %v782 = vpop.f32.mrb[0].mxu0
          %783 = vmatprep.mubr.f32.mxu0 0.0
          %784 = vmatmul.mubr.f32.gmra.mrb[0].mxu0 %v640
          %v785 = vpop.f32.mrb[0].mxu0
          %v786 = vadd.f32 %v667, %v785
          %v787 = vpop.f32.mrb[0].mxu0
          %788 = vmatprep.mubr.f32.mxu0 0.0
          %789 = vmatmul.mubr.f32.gmra.mrb[0].mxu0 %v641
          %v790 = vpop.f32.mrb[0].mxu0
          %v791 = vadd.f32 %v667, %v790
          %v792 = vpop.f32.mrb[0].mxu0
          %793 = vmatprep.mubr.f32.mxu0 0.0
          %794 = vmatmul.mubr.f32.gmra.mrb[0].mxu0 %v642
          %v795 = vpop.f32.mrb[0].mxu0
          %v796 = vadd.f32 %v667, %v795
          %v797 = vpop.f32.mrb[0].mxu0
          %798 = vmatprep.mubr.f32.mxu0 0.0
          %799 = vmatmul.mubr.f32.gmra.mrb[0].mxu0 %v643
          %v800 = vpop.f32.mrb[0].mxu0
          %v801 = vadd.f32 %v667, %v800
          %v802 = vpop.f32.mrb[0].mxu0
          %803 = vmatprep.mubr.f32.mxu0 0.0
          %804 = vmatmul.mubr.f32.gmra.mrb[0].mxu0 %v644
          %v805 = vpop.f32.mrb[0].mxu0
          %v806 = vadd.f32 %v667, %v805
          %v807 = vpop.f32.mrb[0].mxu0
          %808 = vmatprep.mubr.f32.mxu0 0.0
          %809 = vmatmul.mubr.f32.gmra.mrb[0].mxu0 %v645
          %v810 = vpop.f32.mrb[0].mxu0
          %v811 = vadd.f32 %v667, %v810
          %v812 = vpop.f32.mrb[0].mxu0
          %813 = vdwg.mxu0
          %v814 = vmax.f32 %v736, 0.0
          %v815 = vmax.f32 %v741, 0.0
          %v816 = vmax.f32 %v746, 0.0
          %v817 = vmax.f32 %v751, 0.0
          %v818 = vmax.f32 %v756, 0.0
          %v819 = vmax.f32 %v761, 0.0
          %v820 = vmax.f32 %v766, 0.0
          %v821 = vmax.f32 %v771, 0.0
          %v822 = vmax.f32 %v776, 0.0
          %v823 = vmax.f32 %v781, 0.0
          %v824 = vmax.f32 %v786, 0.0
          %v825 = vmax.f32 %v791, 0.0
          %v826 = vmax.f32 %v796, 0.0
          %v827 = vmax.f32 %v801, 0.0
          %v828 = vmax.f32 %v806, 0.0
          %v829 = vmax.f32 %v811, 0.0
          %v830 = vld [vmem:[%s6] sm:$0x1]
          %v832 = vlaneseq
          %v833 = vshrl.u32 %v832, 7
          %v834 = vsub.s32 0, %v833
          %v835 = vrot.slane %v830, %v834
          %v837 = vmul.f32 %v814, %v835
          %v838 = vmul.f32 %v815, %v835
          %v839 = vmul.f32 %v816, %v835
          %v840 = vmul.f32 %v817, %v835
          %v841 = vmul.f32 %v818, %v835
          %v842 = vmul.f32 %v819, %v835
          %v843 = vmul.f32 %v820, %v835
          %v844 = vmul.f32 %v821, %v835
          %v845 = vmul.f32 %v822, %v835
          %v846 = vmul.f32 %v823, %v835
          %v847 = vmul.f32 %v824, %v835
          %v848 = vmul.f32 %v825, %v835
          %v849 = vmul.f32 %v826, %v835
          %v850 = vmul.f32 %v827, %v835
          %v851 = vmul.f32 %v828, %v835
          %v852 = vmul.f32 %v829, %v835
          %853 = vadd.xlane.f32.xlu0 %v837
          %v854 = vpop.xlane.xlu0 %853
          %855 = vadd.xlane.f32.xlu0 %v838
          %v856 = vpop.xlane.xlu0 %855
          %857 = vadd.xlane.f32.xlu0 %v839
          %v858 = vpop.xlane.xlu0 %857
          %859 = vadd.xlane.f32.xlu0 %v840
          %v860 = vpop.xlane.xlu0 %859
          %861 = vadd.xlane.f32.xlu0 %v841
          %v862 = vpop.xlane.xlu0 %861
          %863 = vadd.xlane.f32.xlu0 %v842
          %v864 = vpop.xlane.xlu0 %863
          %865 = vadd.xlane.f32.xlu0 %v843
          %v866 = vpop.xlane.xlu0 %865
          %867 = vadd.xlane.f32.xlu0 %v844
          %v868 = vpop.xlane.xlu0 %867
          %869 = vadd.xlane.f32.xlu0 %v845
          %v870 = vpop.xlane.xlu0 %869
          %871 = vadd.xlane.f32.xlu0 %v846
          %v872 = vpop.xlane.xlu0 %871
          %873 = vadd.xlane.f32.xlu0 %v847
          %v874 = vpop.xlane.xlu0 %873
          %875 = vadd.xlane.f32.xlu0 %v848
          %v876 = vpop.xlane.xlu0 %875
          %877 = vadd.xlane.f32.xlu0 %v849
          %v878 = vpop.xlane.xlu0 %877
          %879 = vadd.xlane.f32.xlu0 %v850
          %v880 = vpop.xlane.xlu0 %879
          %881 = vadd.xlane.f32.xlu0 %v851
          %v882 = vpop.xlane.xlu0 %881
          %883 = vadd.xlane.f32.xlu0 %v852
          %v884 = vpop.xlane.xlu0 %883
          %v885 = vld [vmem:[#allocation3] sm:$0x1]
          %v887 = vlaneseq
          %v888 = vshrl.u32 %v887, 7
          %v889 = vsub.s32 0, %v888
          %v890 = vrot.slane %v885, %v889
          %v892 = vadd.f32 %v854, %v890
          %v893 = vadd.f32 %v856, %v890
          %v894 = vadd.f32 %v858, %v890
          %v895 = vadd.f32 %v860, %v890
          %v896 = vadd.f32 %v862, %v890
          %v897 = vadd.f32 %v864, %v890
          %v898 = vadd.f32 %v866, %v890
          %v899 = vadd.f32 %v868, %v890
          %v900 = vadd.f32 %v870, %v890
          %v901 = vadd.f32 %v872, %v890
          %v902 = vadd.f32 %v874, %v890
          %v903 = vadd.f32 %v876, %v890
          %v904 = vadd.f32 %v878, %v890
          %v905 = vadd.f32 %v880, %v890
          %v906 = vadd.f32 %v882, %v890
          %v907 = vadd.f32 %v884, %v890
          %v908 = vsub.f32 0.0, %v892
          %v909 = vsub.f32 0.0, %v893
          %v910 = vsub.f32 0.0, %v894
          %v911 = vsub.f32 0.0, %v895
          %v912 = vsub.f32 0.0, %v896
          %v913 = vsub.f32 0.0, %v897
          %v914 = vsub.f32 0.0, %v898
          %v915 = vsub.f32 0.0, %v899
          %v916 = vsub.f32 0.0, %v900
          %v917 = vsub.f32 0.0, %v901
          %v918 = vsub.f32 0.0, %v902
          %v919 = vsub.f32 0.0, %v903
          %v920 = vsub.f32 0.0, %v904
          %v921 = vsub.f32 0.0, %v905
          %v922 = vsub.f32 0.0, %v906
          %v923 = vsub.f32 0.0, %v907
          %v924 = vmul.f32 %v908, 1.442695
          %v925 = vpow.pop %v924
          %v926 = vmul.f32 %v909, 1.442695
          %v927 = vpow.pop %v926
          %v928 = vmul.f32 %v910, 1.442695
          %v929 = vpow.pop %v928
          %v930 = vmul.f32 %v911, 1.442695
          %v931 = vpow.pop %v930
          %v932 = vmul.f32 %v912, 1.442695
          %v933 = vpow.pop %v932
          %v934 = vmul.f32 %v913, 1.442695
          %v935 = vpow.pop %v934
          %v936 = vmul.f32 %v914, 1.442695
          %v937 = vpow.pop %v936
          %v938 = vmul.f32 %v915, 1.442695
          %v939 = vpow.pop %v938
          %v940 = vmul.f32 %v916, 1.442695
          %v941 = vpow.pop %v940
          %v942 = vmul.f32 %v917, 1.442695
          %v943 = vpow.pop %v942
          %v944 = vmul.f32 %v918, 1.442695
          %v945 = vpow.pop %v944
          %v946 = vmul.f32 %v919, 1.442695
          %v947 = vpow.pop %v946
          %v948 = vmul.f32 %v920, 1.442695
          %v949 = vpow.pop %v948
          %v950 = vmul.f32 %v921, 1.442695
          %v951 = vpow.pop %v950
          %v952 = vmul.f32 %v922, 1.442695
          %v953 = vpow.pop %v952
          %v954 = vmul.f32 %v923, 1.442695
          %v955 = vpow.pop %v954
          %v956 = vadd.f32 %v925, 1.0
          %v957 = vadd.f32 %v927, 1.0
          %v958 = vadd.f32 %v929, 1.0
          %v959 = vadd.f32 %v931, 1.0
          %v960 = vadd.f32 %v933, 1.0
          %v961 = vadd.f32 %v935, 1.0
          %v962 = vadd.f32 %v937, 1.0
          %v963 = vadd.f32 %v939, 1.0
          %v964 = vadd.f32 %v941, 1.0
          %v965 = vadd.f32 %v943, 1.0
          %v966 = vadd.f32 %v945, 1.0
          %v967 = vadd.f32 %v947, 1.0
          %v968 = vadd.f32 %v949, 1.0
          %v969 = vadd.f32 %v951, 1.0
          %v970 = vadd.f32 %v953, 1.0
          %v971 = vadd.f32 %v955, 1.0
          %v972 = vrcp.pop %v956
          %v973 = vrcp.pop %v957
          %v974 = vrcp.pop %v958
          %v975 = vrcp.pop %v959
          %v976 = vrcp.pop %v960
          %v977 = vrcp.pop %v961
          %v978 = vrcp.pop %v962
          %v979 = vrcp.pop %v963
          %v980 = vrcp.pop %v964
          %v981 = vrcp.pop %v965
          %v982 = vrcp.pop %v966
          %v983 = vrcp.pop %v967
          %v984 = vrcp.pop %v968
          %v985 = vrcp.pop %v969
          %v986 = vrcp.pop %v970
          %v987 = vrcp.pop %v971
          %v988 = vmul.f32 %v972, 1.442695
          %v989 = vpow.pop %v988
          %v990 = vmul.f32 %v973, 1.442695
          %v991 = vpow.pop %v990
          %v992 = vmul.f32 %v974, 1.442695
          %v993 = vpow.pop %v992
          %v994 = vmul.f32 %v975, 1.442695
          %v995 = vpow.pop %v994
          %v996 = vmul.f32 %v976, 1.442695
          %v997 = vpow.pop %v996
          %v998 = vmul.f32 %v977, 1.442695
          %v999 = vpow.pop %v998
          %v1000 = vmul.f32 %v978, 1.442695
          %v1001 = vpow.pop %v1000
          %v1002 = vmul.f32 %v979, 1.442695
          %v1003 = vpow.pop %v1002
          %v1004 = vmul.f32 %v980, 1.442695
          %v1005 = vpow.pop %v1004
          %v1006 = vmul.f32 %v981, 1.442695
          %v1007 = vpow.pop %v1006
          %v1008 = vmul.f32 %v982, 1.442695
          %v1009 = vpow.pop %v1008
          %v1010 = vmul.f32 %v983, 1.442695
          %v1011 = vpow.pop %v1010
          %v1012 = vmul.f32 %v984, 1.442695
          %v1013 = vpow.pop %v1012
          %v1014 = vmul.f32 %v985, 1.442695
          %v1015 = vpow.pop %v1014
          %v1016 = vmul.f32 %v986, 1.442695
          %v1017 = vpow.pop %v1016
          %v1018 = vmul.f32 %v987, 1.442695
          %v1019 = vpow.pop %v1018
          %s1020 = scalar_lea.vmem %s0, %s623
          %v1021 = vld [vmem:[%s1020] sm:$0x1]
          %v1022 = vlaneseq
          %v1023 = vshrl.u32 %v1022, 7
          %v1024 = vadd.s32 %v1023, 8
          %v1025 = vlaneseq
          %v1026 = vshrl.u32 %v1025, 7
          %v1027 = vsub.s32 0, %v1026
          %v1028 = vrot.slane %v1021, %v1027
          %vm1029 = vcmp.eq.s32.totalorder %v1023, %v1028
          %vm1030 = vcmp.eq.s32.totalorder %v1024, %v1028
          %v1031 = vsel %vm1029, 1, 0
          %v1032 = vsel %vm1030, 1, 0
          %v1033 = vcvt.s32.f32 %v1031
          %v1034 = vcvt.s32.f32 %v1032
          %1036 = vset.pattern.permute.xlu0 0
          %1037 = vperm.xlu0 %1036, %v989
          %v1038 = vpop.permute.xlu0 %1037
          %1041 = vset.pattern.permute.xlu0 0
          %1042 = vperm.xlu0 %1041, %v991
          %v1043 = vpop.permute.xlu0 %1042
          %1046 = vset.pattern.permute.xlu0 0
          %1047 = vperm.xlu0 %1046, %v993
          %v1048 = vpop.permute.xlu0 %1047
          %1051 = vset.pattern.permute.xlu0 0
          %1052 = vperm.xlu0 %1051, %v995
          %v1053 = vpop.permute.xlu0 %1052
          %1056 = vset.pattern.permute.xlu0 0
          %1057 = vperm.xlu0 %1056, %v997
          %v1058 = vpop.permute.xlu0 %1057
          %1061 = vset.pattern.permute.xlu0 0
          %1062 = vperm.xlu0 %1061, %v999
          %v1063 = vpop.permute.xlu0 %1062
          %1066 = vset.pattern.permute.xlu0 0
          %1067 = vperm.xlu0 %1066, %v1001
          %v1068 = vpop.permute.xlu0 %1067
          %1071 = vset.pattern.permute.xlu0 0
          %1072 = vperm.xlu0 %1071, %v1003
          %v1073 = vpop.permute.xlu0 %1072
          %1076 = vset.pattern.permute.xlu0 0
          %1077 = vperm.xlu0 %1076, %v1005
          %v1078 = vpop.permute.xlu0 %1077
          %1081 = vset.pattern.permute.xlu0 0
          %1082 = vperm.xlu0 %1081, %v1007
          %v1083 = vpop.permute.xlu0 %1082
          %1086 = vset.pattern.permute.xlu0 0
          %1087 = vperm.xlu0 %1086, %v1009
          %v1088 = vpop.permute.xlu0 %1087
          %1091 = vset.pattern.permute.xlu0 0
          %1092 = vperm.xlu0 %1091, %v1011
          %v1093 = vpop.permute.xlu0 %1092
          %1096 = vset.pattern.permute.xlu0 0
          %1097 = vperm.xlu0 %1096, %v1013
          %v1098 = vpop.permute.xlu0 %1097
          %1101 = vset.pattern.permute.xlu0 0
          %1102 = vperm.xlu0 %1101, %v1015
          %v1103 = vpop.permute.xlu0 %1102
          %1106 = vset.pattern.permute.xlu0 0
          %1107 = vperm.xlu0 %1106, %v1017
          %v1108 = vpop.permute.xlu0 %1107
          %1111 = vset.pattern.permute.xlu0 0
          %1112 = vperm.xlu0 %1111, %v1019
          %v1113 = vpop.permute.xlu0 %1112
          %v1115 = vmul.f32 %v630, %v1038
          %v1116 = vmul.f32 %v631, %v1043
          %v1117 = vmul.f32 %v632, %v1048
          %v1118 = vmul.f32 %v633, %v1053
          %v1119 = vmul.f32 %v634, %v1058
          %v1120 = vmul.f32 %v635, %v1063
          %v1121 = vmul.f32 %v636, %v1068
          %v1122 = vmul.f32 %v637, %v1073
          %v1123 = vmul.f32 %v638, %v1078
          %v1124 = vmul.f32 %v639, %v1083
          %v1125 = vmul.f32 %v640, %v1088
          %v1126 = vmul.f32 %v641, %v1093
          %v1127 = vmul.f32 %v642, %v1098
          %v1128 = vmul.f32 %v643, %v1103
          %v1129 = vmul.f32 %v644, %v1108
          %v1130 = vmul.f32 %v645, %v1113
          %v1131 = vmul.f32 %v619, %v1038
          %v1132 = vmul.f32 %v619, %v1043
          %v1133 = vmul.f32 %v619, %v1048
          %v1134 = vmul.f32 %v619, %v1053
          %v1135 = vmul.f32 %v619, %v1058
          %v1136 = vmul.f32 %v619, %v1063
          %v1137 = vmul.f32 %v619, %v1068
          %v1138 = vmul.f32 %v619, %v1073
          %v1139 = vmul.f32 %v619, %v1078
          %v1140 = vmul.f32 %v619, %v1083
          %v1141 = vmul.f32 %v619, %v1088
          %v1142 = vmul.f32 %v619, %v1093
          %v1143 = vmul.f32 %v619, %v1098
          %v1144 = vmul.f32 %v619, %v1103
          %v1145 = vmul.f32 %v619, %v1108
          %v1146 = vmul.f32 %v619, %v1113
          %v1147 = vadd.f32 %v1115, %v1131
          %v1148 = vadd.f32 %v1116, %v1132
          %v1149 = vadd.f32 %v1117, %v1133
          %v1150 = vadd.f32 %v1118, %v1134
          %v1151 = vadd.f32 %v1119, %v1135
          %v1152 = vadd.f32 %v1120, %v1136
          %v1153 = vadd.f32 %v1121, %v1137
          %v1154 = vadd.f32 %v1122, %v1138
          %v1155 = vadd.f32 %v1123, %v1139
          %v1156 = vadd.f32 %v1124, %v1140
          %v1157 = vadd.f32 %v1125, %v1141
          %v1158 = vadd.f32 %v1126, %v1142
          %v1159 = vadd.f32 %v1127, %v1143
          %v1160 = vadd.f32 %v1128, %v1144
          %v1161 = vadd.f32 %v1129, %v1145
          %v1162 = vadd.f32 %v1130, %v1146
          %v1163 = vld [vmem:[#allocation10] sm:$0xff]
          %v1164 = vld [vmem:[#allocation10 + $0x8] sm:$0xff]
          %1165 = vmatprep.subr.mxu0 0.0
          %1166 = vmatpush1.msra.mxu0 %v1147
          %1167 = vmatprep.subr.mxu0 0.0
          %1168 = vmatpush1.msra.mxu0 %v1148
          %1169 = vmatprep.subr.mxu0 0.0
          %1170 = vmatpush1.msra.mxu0 %v1149
          %1171 = vmatprep.subr.mxu0 0.0
          %1172 = vmatpush1.msra.mxu0 %v1150
          %1173 = vmatprep.subr.mxu0 0.0
          %1174 = vmatpush1.msra.mxu0 %v1151
          %1175 = vmatprep.subr.mxu0 0.0
          %1176 = vmatpush1.msra.mxu0 %v1152
          %1177 = vmatprep.subr.mxu0 0.0
          %1178 = vmatpush1.msra.mxu0 %v1153
          %1179 = vmatprep.subr.mxu0 0.0
          %1180 = vmatpush1.msra.mxu0 %v1154
          %1181 = vmatprep.subr.mxu0 0.0
          %1182 = vmatpush1.msra.mxu0 %v1155
          %1183 = vmatprep.subr.mxu0 0.0
          %1184 = vmatpush1.msra.mxu0 %v1156
          %1185 = vmatprep.subr.mxu0 0.0
          %1186 = vmatpush1.msra.mxu0 %v1157
          %1187 = vmatprep.subr.mxu0 0.0
          %1188 = vmatpush1.msra.mxu0 %v1158
          %1189 = vmatprep.subr.mxu0 0.0
          %1190 = vmatpush1.msra.mxu0 %v1159
          %1191 = vmatprep.subr.mxu0 0.0
          %1192 = vmatpush1.msra.mxu0 %v1160
          %1193 = vmatprep.subr.mxu0 0.0
          %1194 = vmatpush1.msra.mxu0 %v1161
          %1195 = vmatprep.subr.mxu0 0.0
          %1196 = vmatpush1.msra.mxu0 %v1162
          %1197 = vmatprep.subr.mxu0 0.0
          %1198 = vmatpush1.msra.mxu0 0.0
          %1199 = vmatprep.subr.mxu0 0.0
          %1200 = vmatpush1.msra.mxu0 0.0
          %1201 = vmatprep.subr.mxu0 0.0
          %1202 = vmatpush1.msra.mxu0 0.0
          %1203 = vmatprep.subr.mxu0 0.0
          %1204 = vmatpush1.msra.mxu0 0.0
          %1205 = vmatprep.subr.mxu0 0.0
          %1206 = vmatpush1.msra.mxu0 0.0
          %1207 = vmatprep.subr.mxu0 0.0
          %1208 = vmatpush1.msra.mxu0 0.0
          %1209 = vmatprep.subr.mxu0 0.0
          %1210 = vmatpush1.msra.mxu0 0.0
          %1211 = vmatprep.subr.mxu0 0.0
          %1212 = vmatpush1.msra.mxu0 0.0
          %1213 = vmatprep.subr.mxu0 0.0
          %1214 = vmatpush1.msra.mxu0 0.0
          %1215 = vmatprep.subr.mxu0 0.0
          %1216 = vmatpush1.msra.mxu0 0.0
          %1217 = vmatprep.subr.mxu0 0.0
          %1218 = vmatpush1.msra.mxu0 0.0
          %1219 = vmatprep.subr.mxu0 0.0
          %1220 = vmatpush1.msra.mxu0 0.0
          %1221 = vmatprep.subr.mxu0 0.0
          %1222 = vmatpush1.msra.mxu0 0.0
          %1223 = vmatprep.subr.mxu0 0.0
          %1224 = vmatpush1.msra.mxu0 0.0
          %1225 = vmatprep.subr.mxu0 0.0
          %1226 = vmatpush1.msra.mxu0 0.0
          %1227 = vmatprep.subr.mxu0 0.0
          %1228 = vmatpush1.msra.mxu0 0.0
          %1229 = vmatprep.mubr.f32.mxu0 0.0
          %1230 = vmatmul.mubr.f32.gmra.mrb[0].mxu0 %v1033
          %v1231 = vpop.f32.mrb[0].mxu0
          %v1232 = vadd.f32 0.0, %v1231
          %v1233 = vpop.f32.mrb[0].mxu0
          %1234 = vmatprep.mubr.f32.mxu0 0.0
          %1235 = vmatmul.mubr.f32.gmra.mrb[0].mxu0 %v1034
          %v1236 = vpop.f32.mrb[0].mxu0
          %v1237 = vadd.f32 0.0, %v1236
          %v1238 = vpop.f32.mrb[0].mxu0
          %1239 = vdwg.mxu0
          %v1240 = vadd.f32 %v1163, %v1232
          %v1241 = vadd.f32 %v1164, %v1237
          %1242 = vst [vmem:[#allocation10] sm:$0xff] %v1240
          %1243 = vst [vmem:[#allocation10 + $0x8] sm:$0xff] %v1241
        $region101: #{tpu_custom_call.1} parent=83 // loop_footer
          %s627 = sadd.s32 1, %s623
        $region102: #{tpu_custom_call.1} parent=83 // loop_footer_branch
          %622 = sbr.rel target = $region98
        $region103: #{tpu_custom_call.1} parent=83 // loop_exit
          _
        %v1244 = vld [vmem:[#allocation10] sm:$0xff]
        %v1245 = vld [vmem:[#allocation10 + $0x8] sm:$0xff]
        %vm1246 = vcmp.gt.f32.partialorder %v1244, 0.0
        %vm1247 = vcmp.gt.f32.partialorder %v1245, 0.0
        %v1248 = vsel %vm1246, %v1244, 1.0
        %v1249 = vsel %vm1247, %v1245, 1.0
        %v1250 = vld [vmem:[%s14] sm:$0xff]
        %v1251 = vld [vmem:[%s14 + $0x8] sm:$0xff]
        %1254 = vrot.lane.b32.xlu0 %v1250, 127
        %v1255 = vpop.permute.xlu0 %1254
        %1256 = vrot.lane.b32.xlu0 %v1251, 127
        %v1257 = vpop.permute.xlu0 %1256
        %v1260 = vmul.f32 %v1248, %v1255
        %v1261 = vmul.f32 %v1249, %v1257
        %v1262 = vrcp.pop %v1260
        %v1263 = vrcp.pop %v1261
        %1265 = vset.pattern.permute.xlu0 127
        %1266 = vperm.xlu0 %1265, %v1262
        %v1267 = vpop.permute.xlu0 %1266
        %1270 = vset.pattern.permute.xlu0 127
        %1271 = vperm.xlu0 %1270, %v1263
        %v1272 = vpop.permute.xlu0 %1271
        %v1274 = vmul.f32 %v1244, %v1267
        %v1275 = vmul.f32 %v1245, %v1272
        %vm1276 = vcmp.lt.s32.totalorder %v616, 16
        %v1277 = vsel %vm1276, 1, 0
        %v1278 = vcvt.s32.f32 %v1277
        %v1279 = vmul.f32 %v1274, %v1278
        %v1280 = vmul.f32 %v1275, %v1278
        %v1281 = vld [vmem:[%s15] sm:$0xff]
        %v1282 = vld [vmem:[%s15 + $0x8] sm:$0xff]
        %v1283 = vadd.f32 %v1279, %v1281
        %v1284 = vadd.f32 %v1280, %v1282
        %1285 = vst [vmem:[#allocation10] sm:$0xff] %v1283
        %1286 = vst [vmem:[#allocation10 + $0x8] sm:$0xff] %v1284
        %v1287 = vld [vmem:[%s8] sm:$0xff]
        %v1288 = vld [vmem:[%s8 + $0x8] sm:$0xff]
        %v1289 = vld [vmem:[%s8 + $0x10] sm:$0xff]
        %v1290 = vld [vmem:[%s8 + $0x18] sm:$0xff]
        %v1291 = vld [vmem:[%s8 + $0x20] sm:$0xff]
        %v1292 = vld [vmem:[%s8 + $0x28] sm:$0xff]
        %v1293 = vld [vmem:[%s8 + $0x30] sm:$0xff]
        %v1294 = vld [vmem:[%s8 + $0x38] sm:$0xff]
        %v1295 = vld [vmem:[%s8 + $0x40] sm:$0xff]
        %v1296 = vld [vmem:[%s8 + $0x48] sm:$0xff]
        %v1297 = vld [vmem:[%s8 + $0x50] sm:$0xff]
        %v1298 = vld [vmem:[%s8 + $0x58] sm:$0xff]
        %v1299 = vld [vmem:[%s8 + $0x60] sm:$0xff]
        %v1300 = vld [vmem:[%s8 + $0x68] sm:$0xff]
        %v1301 = vld [vmem:[%s8 + $0x70] sm:$0xff]
        %v1302 = vld [vmem:[%s8 + $0x78] sm:$0xff]
        %1303 = vmatprep.subr.mxu0 0.0
        %1304 = vmatpush1.msra.mxu0 %v1287
        %1305 = vmatprep.subr.mxu0 0.0
        %1306 = vmatpush1.msra.mxu0 %v1288
        %1307 = vmatprep.subr.mxu0 0.0
        %1308 = vmatpush1.msra.mxu0 %v1289
        %1309 = vmatprep.subr.mxu0 0.0
        %1310 = vmatpush1.msra.mxu0 %v1290
        %1311 = vmatprep.subr.mxu0 0.0
        %1312 = vmatpush1.msra.mxu0 %v1291
        %1313 = vmatprep.subr.mxu0 0.0
        %1314 = vmatpush1.msra.mxu0 %v1292
        %1315 = vmatprep.subr.mxu0 0.0
        %1316 = vmatpush1.msra.mxu0 %v1293
        %1317 = vmatprep.subr.mxu0 0.0
        %1318 = vmatpush1.msra.mxu0 %v1294
        %1319 = vmatprep.subr.mxu0 0.0
        %1320 = vmatpush1.msra.mxu0 %v1295
        %1321 = vmatprep.subr.mxu0 0.0
        %1322 = vmatpush1.msra.mxu0 %v1296
        %1323 = vmatprep.subr.mxu0 0.0
        %1324 = vmatpush1.msra.mxu0 %v1297
        %1325 = vmatprep.subr.mxu0 0.0
        %1326 = vmatpush1.msra.mxu0 %v1298
        %1327 = vmatprep.subr.mxu0 0.0
        %1328 = vmatpush1.msra.mxu0 %v1299
        %1329 = vmatprep.subr.mxu0 0.0
        %1330 = vmatpush1.msra.mxu0 %v1300
        %1331 = vmatprep.subr.mxu0 0.0
        %1332 = vmatpush1.msra.mxu0 %v1301
        %1333 = vmatprep.subr.mxu0 0.0
        %1334 = vmatpush1.msra.mxu0 %v1302
        %1335 = vmatprep.subr.mxu0 0.0
        %1336 = vmatpush1.msra.mxu0 0.0
        %1337 = vmatprep.subr.mxu0 0.0
        %1338 = vmatpush1.msra.mxu0 0.0
        %1339 = vmatprep.subr.mxu0 0.0
        %1340 = vmatpush1.msra.mxu0 0.0
        %1341 = vmatprep.subr.mxu0 0.0
        %1342 = vmatpush1.msra.mxu0 0.0
        %1343 = vmatprep.subr.mxu0 0.0
        %1344 = vmatpush1.msra.mxu0 0.0
        %1345 = vmatprep.subr.mxu0 0.0
        %1346 = vmatpush1.msra.mxu0 0.0
        %1347 = vmatprep.subr.mxu0 0.0
        %1348 = vmatpush1.msra.mxu0 0.0
        %1349 = vmatprep.subr.mxu0 0.0
        %1350 = vmatpush1.msra.mxu0 0.0
        %1351 = vmatprep.subr.mxu0 0.0
        %1352 = vmatpush1.msra.mxu0 0.0
        %1353 = vmatprep.subr.mxu0 0.0
        %1354 = vmatpush1.msra.mxu0 0.0
        %1355 = vmatprep.subr.mxu0 0.0
        %1356 = vmatpush1.msra.mxu0 0.0
        %1357 = vmatprep.subr.mxu0 0.0
        %1358 = vmatpush1.msra.mxu0 0.0
        %1359 = vmatprep.subr.mxu0 0.0
        %1360 = vmatpush1.msra.mxu0 0.0
        %1361 = vmatprep.subr.mxu0 0.0
        %1362 = vmatpush1.msra.mxu0 0.0
        %1363 = vmatprep.subr.mxu0 0.0
        %1364 = vmatpush1.msra.mxu0 0.0
        %1365 = vmatprep.subr.mxu0 0.0
        %1366 = vmatpush1.msra.mxu0 0.0
        %1367 = vmatprep.mubr.f32.mxu0 0.0
        %1368 = vmatmul.mubr.f32.gmra.mrb[0].mxu0 %v1283
        %v1369 = vpop.f32.mrb[0].mxu0
        %v1370 = vadd.f32 0.0, %v1369
        %v1371 = vpop.f32.mrb[0].mxu0
        %1372 = vmatprep.mubr.f32.mxu0 0.0
        %1373 = vmatmul.mubr.f32.gmra.mrb[0].mxu0 %v1284
        %v1374 = vpop.f32.mrb[0].mxu0
        %v1375 = vadd.f32 0.0, %v1374
        %v1376 = vpop.f32.mrb[0].mxu0
        %1377 = vdwg.mxu0
        %v1378 = vld [vmem:[#allocation5] sm:$0xff]
        %v1379 = vld [vmem:[#allocation5 + $0x8] sm:$0xff]
        %v1380 = vld [vmem:[#allocation5 + $0x10] sm:$0xff]
        %v1381 = vld [vmem:[#allocation5 + $0x18] sm:$0xff]
        %v1382 = vld [vmem:[#allocation5 + $0x20] sm:$0xff]
        %v1383 = vld [vmem:[#allocation5 + $0x28] sm:$0xff]
        %v1384 = vld [vmem:[#allocation5 + $0x30] sm:$0xff]
        %v1385 = vld [vmem:[#allocation5 + $0x38] sm:$0xff]
        %v1386 = vld [vmem:[#allocation5 + $0x40] sm:$0xff]
        %v1387 = vld [vmem:[#allocation5 + $0x48] sm:$0xff]
        %v1388 = vld [vmem:[#allocation5 + $0x50] sm:$0xff]
        %v1389 = vld [vmem:[#allocation5 + $0x58] sm:$0xff]
        %v1390 = vld [vmem:[#allocation5 + $0x60] sm:$0xff]
        %v1391 = vld [vmem:[#allocation5 + $0x68] sm:$0xff]
        %v1392 = vld [vmem:[#allocation5 + $0x70] sm:$0xff]
        %v1393 = vld [vmem:[#allocation5 + $0x78] sm:$0xff]
        %1394 = vmatprep.subr.mxu0 0.0
        %1395 = vmatpush1.msra.mxu0 %v1378
        %1396 = vmatprep.subr.mxu0 0.0
        %1397 = vmatpush1.msra.mxu0 %v1379
        %1398 = vmatprep.subr.mxu0 0.0
        %1399 = vmatpush1.msra.mxu0 %v1380
        %1400 = vmatprep.subr.mxu0 0.0
        %1401 = vmatpush1.msra.mxu0 %v1381
        %1402 = vmatprep.subr.mxu0 0.0
        %1403 = vmatpush1.msra.mxu0 %v1382
        %1404 = vmatprep.subr.mxu0 0.0
        %1405 = vmatpush1.msra.mxu0 %v1383
        %1406 = vmatprep.subr.mxu0 0.0
        %1407 = vmatpush1.msra.mxu0 %v1384
        %1408 = vmatprep.subr.mxu0 0.0
        %1409 = vmatpush1.msra.mxu0 %v1385
        %1410 = vmatprep.subr.mxu0 0.0
        %1411 = vmatpush1.msra.mxu0 %v1386
        %1412 = vmatprep.subr.mxu0 0.0
        %1413 = vmatpush1.msra.mxu0 %v1387
        %1414 = vmatprep.subr.mxu0 0.0
        %1415 = vmatpush1.msra.mxu0 %v1388
        %1416 = vmatprep.subr.mxu0 0.0
        %1417 = vmatpush1.msra.mxu0 %v1389
        %1418 = vmatprep.subr.mxu0 0.0
        %1419 = vmatpush1.msra.mxu0 %v1390
        %1420 = vmatprep.subr.mxu0 0.0
        %1421 = vmatpush1.msra.mxu0 %v1391
        %1422 = vmatprep.subr.mxu0 0.0
        %1423 = vmatpush1.msra.mxu0 %v1392
        %1424 = vmatprep.subr.mxu0 0.0
        %1425 = vmatpush1.msra.mxu0 %v1393
        %1426 = vmatprep.subr.mxu0 0.0
        %1427 = vmatpush1.msra.mxu0 0.0
        %1428 = vmatprep.subr.mxu0 0.0
        %1429 = vmatpush1.msra.mxu0 0.0
        %1430 = vmatprep.subr.mxu0 0.0
        %1431 = vmatpush1.msra.mxu0 0.0
        %1432 = vmatprep.subr.mxu0 0.0
        %1433 = vmatpush1.msra.mxu0 0.0
        %1434 = vmatprep.subr.mxu0 0.0
        %1435 = vmatpush1.msra.mxu0 0.0
        %1436 = vmatprep.subr.mxu0 0.0
        %1437 = vmatpush1.msra.mxu0 0.0
        %1438 = vmatprep.subr.mxu0 0.0
        %1439 = vmatpush1.msra.mxu0 0.0
        %1440 = vmatprep.subr.mxu0 0.0
        %1441 = vmatpush1.msra.mxu0 0.0
        %1442 = vmatprep.subr.mxu0 0.0
        %1443 = vmatpush1.msra.mxu0 0.0
        %1444 = vmatprep.subr.mxu0 0.0
        %1445 = vmatpush1.msra.mxu0 0.0
        %1446 = vmatprep.subr.mxu0 0.0
        %1447 = vmatpush1.msra.mxu0 0.0
        %1448 = vmatprep.subr.mxu0 0.0
        %1449 = vmatpush1.msra.mxu0 0.0
        %1450 = vmatprep.subr.mxu0 0.0
        %1451 = vmatpush1.msra.mxu0 0.0
        %1452 = vmatprep.subr.mxu0 0.0
        %1453 = vmatpush1.msra.mxu0 0.0
        %1454 = vmatprep.subr.mxu0 0.0
        %1455 = vmatpush1.msra.mxu0 0.0
        %1456 = vmatprep.subr.mxu0 0.0
        %1457 = vmatpush1.msra.mxu0 0.0
        %1458 = vmatprep.mubr.f32.mxu0 0.0
        %1459 = vmatmul.mubr.f32.gmra.mrb[0].mxu0 %v1283
        %v1460 = vpop.f32.mrb[0].mxu0
        %v1461 = vadd.f32 0.0, %v1460
        %v1462 = vpop.f32.mrb[0].mxu0
        %1463 = vmatprep.mubr.f32.mxu0 0.0
        %1464 = vmatmul.mubr.f32.gmra.mrb[0].mxu0 %v1284
        %v1465 = vpop.f32.mrb[0].mxu0
        %v1466 = vadd.f32 0.0, %v1465
        %v1467 = vpop.f32.mrb[0].mxu0
        %1468 = vdwg.mxu0
        loop: start=0, step=1, limit=2
        $region104: #{tpu_custom_call.1} parent=83 // loop_pre_header
          _
        $region105: #{tpu_custom_call.1} parent=83 // loop_header
          %s1470 = sphi 0, %s1474
          %p1471 = scmp.ge.s32.totalorder %s1470, 2
        $region106: #{tpu_custom_call.1} parent=83 // loop_header_branch
          %1473 = sbr.rel (%p1471) target = $region110
        $region107: #{tpu_custom_call.1} parent=83 // loop_body
          %s1475 = smul.u32 %s1470, 128
          %s1476 = scalar_lea.vmem [#allocation2], %s1475
          %v1477 = vld [vmem:[%s1476] sm:$0xff]
          %v1478 = vld [vmem:[%s1476 + $0x8] sm:$0xff]
          %v1479 = vld [vmem:[%s1476 + $0x10] sm:$0xff]
          %v1480 = vld [vmem:[%s1476 + $0x18] sm:$0xff]
          %v1481 = vld [vmem:[%s1476 + $0x20] sm:$0xff]
          %v1482 = vld [vmem:[%s1476 + $0x28] sm:$0xff]
          %v1483 = vld [vmem:[%s1476 + $0x30] sm:$0xff]
          %v1484 = vld [vmem:[%s1476 + $0x38] sm:$0xff]
          %v1485 = vld [vmem:[%s1476 + $0x40] sm:$0xff]
          %v1486 = vld [vmem:[%s1476 + $0x48] sm:$0xff]
          %v1487 = vld [vmem:[%s1476 + $0x50] sm:$0xff]
          %v1488 = vld [vmem:[%s1476 + $0x58] sm:$0xff]
          %v1489 = vld [vmem:[%s1476 + $0x60] sm:$0xff]
          %v1490 = vld [vmem:[%s1476 + $0x68] sm:$0xff]
          %v1491 = vld [vmem:[%s1476 + $0x70] sm:$0xff]
          %v1492 = vld [vmem:[%s1476 + $0x78] sm:$0xff]
          %s1493 = scalar_lea.vmem %s1, %s1475
          %v1494 = vld [vmem:[%s1493] sm:$0xff]
          %v1495 = vld [vmem:[%s1493 + $0x8] sm:$0xff]
          %v1496 = vld [vmem:[%s1493 + $0x10] sm:$0xff]
          %v1497 = vld [vmem:[%s1493 + $0x18] sm:$0xff]
          %v1498 = vld [vmem:[%s1493 + $0x20] sm:$0xff]
          %v1499 = vld [vmem:[%s1493 + $0x28] sm:$0xff]
          %v1500 = vld [vmem:[%s1493 + $0x30] sm:$0xff]
          %v1501 = vld [vmem:[%s1493 + $0x38] sm:$0xff]
          %v1502 = vld [vmem:[%s1493 + $0x40] sm:$0xff]
          %v1503 = vld [vmem:[%s1493 + $0x48] sm:$0xff]
          %v1504 = vld [vmem:[%s1493 + $0x50] sm:$0xff]
          %v1505 = vld [vmem:[%s1493 + $0x58] sm:$0xff]
          %v1506 = vld [vmem:[%s1493 + $0x60] sm:$0xff]
          %v1507 = vld [vmem:[%s1493 + $0x68] sm:$0xff]
          %v1508 = vld [vmem:[%s1493 + $0x70] sm:$0xff]
          %v1509 = vld [vmem:[%s1493 + $0x78] sm:$0xff]
          %1510 = vset.pattern.permute.xlu0 0
          %1511 = vperm.xlu0 %1510, %v1494
          %v1512 = vpop.permute.xlu0 %1511
          %1513 = vset.pattern.permute.xlu0 0
          %1514 = vperm.xlu0 %1513, %v1495
          %v1515 = vpop.permute.xlu0 %1514
          %1516 = vset.pattern.permute.xlu0 0
          %1517 = vperm.xlu0 %1516, %v1496
          %v1518 = vpop.permute.xlu0 %1517
          %1519 = vset.pattern.permute.xlu0 0
          %1520 = vperm.xlu0 %1519, %v1497
          %v1521 = vpop.permute.xlu0 %1520
          %1522 = vset.pattern.permute.xlu0 0
          %1523 = vperm.xlu0 %1522, %v1498
          %v1524 = vpop.permute.xlu0 %1523
          %1525 = vset.pattern.permute.xlu0 0
          %1526 = vperm.xlu0 %1525, %v1499
          %v1527 = vpop.permute.xlu0 %1526
          %1528 = vset.pattern.permute.xlu0 0
          %1529 = vperm.xlu0 %1528, %v1500
          %v1530 = vpop.permute.xlu0 %1529
          %1531 = vset.pattern.permute.xlu0 0
          %1532 = vperm.xlu0 %1531, %v1501
          %v1533 = vpop.permute.xlu0 %1532
          %1534 = vset.pattern.permute.xlu0 0
          %1535 = vperm.xlu0 %1534, %v1502
          %v1536 = vpop.permute.xlu0 %1535
          %1537 = vset.pattern.permute.xlu0 0
          %1538 = vperm.xlu0 %1537, %v1503
          %v1539 = vpop.permute.xlu0 %1538
          %1540 = vset.pattern.permute.xlu0 0
          %1541 = vperm.xlu0 %1540, %v1504
          %v1542 = vpop.permute.xlu0 %1541
          %1543 = vset.pattern.permute.xlu0 0
          %1544 = vperm.xlu0 %1543, %v1505
          %v1545 = vpop.permute.xlu0 %1544
          %1546 = vset.pattern.permute.xlu0 0
          %1547 = vperm.xlu0 %1546, %v1506
          %v1548 = vpop.permute.xlu0 %1547
          %1549 = vset.pattern.permute.xlu0 0
          %1550 = vperm.xlu0 %1549, %v1507
          %v1551 = vpop.permute.xlu0 %1550
          %1552 = vset.pattern.permute.xlu0 0
          %1553 = vperm.xlu0 %1552, %v1508
          %v1554 = vpop.permute.xlu0 %1553
          %1555 = vset.pattern.permute.xlu0 0
          %1556 = vperm.xlu0 %1555, %v1509
          %v1557 = vpop.permute.xlu0 %1556
          %vm1558 = vcmp.eq.s32.totalorder %v616, %v1512
          %vm1559 = vcmp.eq.s32.totalorder %v616, %v1515
          %vm1560 = vcmp.eq.s32.totalorder %v616, %v1518
          %vm1561 = vcmp.eq.s32.totalorder %v616, %v1521
          %vm1562 = vcmp.eq.s32.totalorder %v616, %v1524
          %vm1563 = vcmp.eq.s32.totalorder %v616, %v1527
          %vm1564 = vcmp.eq.s32.totalorder %v616, %v1530
          %vm1565 = vcmp.eq.s32.totalorder %v616, %v1533
          %vm1566 = vcmp.eq.s32.totalorder %v616, %v1536
          %vm1567 = vcmp.eq.s32.totalorder %v616, %v1539
          %vm1568 = vcmp.eq.s32.totalorder %v616, %v1542
          %vm1569 = vcmp.eq.s32.totalorder %v616, %v1545
          %vm1570 = vcmp.eq.s32.totalorder %v616, %v1548
          %vm1571 = vcmp.eq.s32.totalorder %v616, %v1551
          %vm1572 = vcmp.eq.s32.totalorder %v616, %v1554
          %vm1573 = vcmp.eq.s32.totalorder %v616, %v1557
          %v1574 = vsel %vm1558, 1, 0
          %v1575 = vsel %vm1559, 1, 0
          %v1576 = vsel %vm1560, 1, 0
          %v1577 = vsel %vm1561, 1, 0
          %v1578 = vsel %vm1562, 1, 0
          %v1579 = vsel %vm1563, 1, 0
          %v1580 = vsel %vm1564, 1, 0
          %v1581 = vsel %vm1565, 1, 0
          %v1582 = vsel %vm1566, 1, 0
          %v1583 = vsel %vm1567, 1, 0
          %v1584 = vsel %vm1568, 1, 0
          %v1585 = vsel %vm1569, 1, 0
          %v1586 = vsel %vm1570, 1, 0
          %v1587 = vsel %vm1571, 1, 0
          %v1588 = vsel %vm1572, 1, 0
          %v1589 = vsel %vm1573, 1, 0
          %v1590 = vcvt.s32.f32 %v1574
          %v1591 = vcvt.s32.f32 %v1575
          %v1592 = vcvt.s32.f32 %v1576
          %v1593 = vcvt.s32.f32 %v1577
          %v1594 = vcvt.s32.f32 %v1578
          %v1595 = vcvt.s32.f32 %v1579
          %v1596 = vcvt.s32.f32 %v1580
          %v1597 = vcvt.s32.f32 %v1581
          %v1598 = vcvt.s32.f32 %v1582
          %v1599 = vcvt.s32.f32 %v1583
          %v1600 = vcvt.s32.f32 %v1584
          %v1601 = vcvt.s32.f32 %v1585
          %v1602 = vcvt.s32.f32 %v1586
          %v1603 = vcvt.s32.f32 %v1587
          %v1604 = vcvt.s32.f32 %v1588
          %v1605 = vcvt.s32.f32 %v1589
          %s1606 = scalar_lea.vmem %s2, %s1475
          %v1607 = vld [vmem:[%s1606] sm:$0xff]
          %v1608 = vld [vmem:[%s1606 + $0x8] sm:$0xff]
          %v1609 = vld [vmem:[%s1606 + $0x10] sm:$0xff]
          %v1610 = vld [vmem:[%s1606 + $0x18] sm:$0xff]
          %v1611 = vld [vmem:[%s1606 + $0x20] sm:$0xff]
          %v1612 = vld [vmem:[%s1606 + $0x28] sm:$0xff]
          %v1613 = vld [vmem:[%s1606 + $0x30] sm:$0xff]
          %v1614 = vld [vmem:[%s1606 + $0x38] sm:$0xff]
          %v1615 = vld [vmem:[%s1606 + $0x40] sm:$0xff]
          %v1616 = vld [vmem:[%s1606 + $0x48] sm:$0xff]
          %v1617 = vld [vmem:[%s1606 + $0x50] sm:$0xff]
          %v1618 = vld [vmem:[%s1606 + $0x58] sm:$0xff]
          %v1619 = vld [vmem:[%s1606 + $0x60] sm:$0xff]
          %v1620 = vld [vmem:[%s1606 + $0x68] sm:$0xff]
          %v1621 = vld [vmem:[%s1606 + $0x70] sm:$0xff]
          %v1622 = vld [vmem:[%s1606 + $0x78] sm:$0xff]
          %1623 = vset.pattern.permute.xlu0 0
          %1624 = vperm.xlu0 %1623, %v1607
          %v1625 = vpop.permute.xlu0 %1624
          %1626 = vset.pattern.permute.xlu0 0
          %1627 = vperm.xlu0 %1626, %v1608
          %v1628 = vpop.permute.xlu0 %1627
          %1629 = vset.pattern.permute.xlu0 0
          %1630 = vperm.xlu0 %1629, %v1609
          %v1631 = vpop.permute.xlu0 %1630
          %1632 = vset.pattern.permute.xlu0 0
          %1633 = vperm.xlu0 %1632, %v1610
          %v1634 = vpop.permute.xlu0 %1633
          %1635 = vset.pattern.permute.xlu0 0
          %1636 = vperm.xlu0 %1635, %v1611
          %v1637 = vpop.permute.xlu0 %1636
          %1638 = vset.pattern.permute.xlu0 0
          %1639 = vperm.xlu0 %1638, %v1612
          %v1640 = vpop.permute.xlu0 %1639
          %1641 = vset.pattern.permute.xlu0 0
          %1642 = vperm.xlu0 %1641, %v1613
          %v1643 = vpop.permute.xlu0 %1642
          %1644 = vset.pattern.permute.xlu0 0
          %1645 = vperm.xlu0 %1644, %v1614
          %v1646 = vpop.permute.xlu0 %1645
          %1647 = vset.pattern.permute.xlu0 0
          %1648 = vperm.xlu0 %1647, %v1615
          %v1649 = vpop.permute.xlu0 %1648
          %1650 = vset.pattern.permute.xlu0 0
          %1651 = vperm.xlu0 %1650, %v1616
          %v1652 = vpop.permute.xlu0 %1651
          %1653 = vset.pattern.permute.xlu0 0
          %1654 = vperm.xlu0 %1653, %v1617
          %v1655 = vpop.permute.xlu0 %1654
          %1656 = vset.pattern.permute.xlu0 0
          %1657 = vperm.xlu0 %1656, %v1618
          %v1658 = vpop.permute.xlu0 %1657
          %1659 = vset.pattern.permute.xlu0 0
          %1660 = vperm.xlu0 %1659, %v1619
          %v1661 = vpop.permute.xlu0 %1660
          %1662 = vset.pattern.permute.xlu0 0
          %1663 = vperm.xlu0 %1662, %v1620
          %v1664 = vpop.permute.xlu0 %1663
          %1665 = vset.pattern.permute.xlu0 0
          %1666 = vperm.xlu0 %1665, %v1621
          %v1667 = vpop.permute.xlu0 %1666
          %1668 = vset.pattern.permute.xlu0 0
          %1669 = vperm.xlu0 %1668, %v1622
          %v1670 = vpop.permute.xlu0 %1669
          %vm1671 = vcmp.eq.s32.totalorder %v616, %v1625
          %vm1672 = vcmp.eq.s32.totalorder %v616, %v1628
          %vm1673 = vcmp.eq.s32.totalorder %v616, %v1631
          %vm1674 = vcmp.eq.s32.totalorder %v616, %v1634
          %vm1675 = vcmp.eq.s32.totalorder %v616, %v1637
          %vm1676 = vcmp.eq.s32.totalorder %v616, %v1640
          %vm1677 = vcmp.eq.s32.totalorder %v616, %v1643
          %vm1678 = vcmp.eq.s32.totalorder %v616, %v1646
          %vm1679 = vcmp.eq.s32.totalorder %v616, %v1649
          %vm1680 = vcmp.eq.s32.totalorder %v616, %v1652
          %vm1681 = vcmp.eq.s32.totalorder %v616, %v1655
          %vm1682 = vcmp.eq.s32.totalorder %v616, %v1658
          %vm1683 = vcmp.eq.s32.totalorder %v616, %v1661
          %vm1684 = vcmp.eq.s32.totalorder %v616, %v1664
          %vm1685 = vcmp.eq.s32.totalorder %v616, %v1667
          %vm1686 = vcmp.eq.s32.totalorder %v616, %v1670
          %v1687 = vsel %vm1671, 1, 0
          %v1688 = vsel %vm1672, 1, 0
          %v1689 = vsel %vm1673, 1, 0
          %v1690 = vsel %vm1674, 1, 0
          %v1691 = vsel %vm1675, 1, 0
          %v1692 = vsel %vm1676, 1, 0
          %v1693 = vsel %vm1677, 1, 0
          %v1694 = vsel %vm1678, 1, 0
          %v1695 = vsel %vm1679, 1, 0
          %v1696 = vsel %vm1680, 1, 0
          %v1697 = vsel %vm1681, 1, 0
          %v1698 = vsel %vm1682, 1, 0
          %v1699 = vsel %vm1683, 1, 0
          %v1700 = vsel %vm1684, 1, 0
          %v1701 = vsel %vm1685, 1, 0
          %v1702 = vsel %vm1686, 1, 0
          %v1703 = vcvt.s32.f32 %v1687
          %v1704 = vcvt.s32.f32 %v1688
          %v1705 = vcvt.s32.f32 %v1689
          %v1706 = vcvt.s32.f32 %v1690
          %v1707 = vcvt.s32.f32 %v1691
          %v1708 = vcvt.s32.f32 %v1692
          %v1709 = vcvt.s32.f32 %v1693
          %v1710 = vcvt.s32.f32 %v1694
          %v1711 = vcvt.s32.f32 %v1695
          %v1712 = vcvt.s32.f32 %v1696
          %v1713 = vcvt.s32.f32 %v1697
          %v1714 = vcvt.s32.f32 %v1698
          %v1715 = vcvt.s32.f32 %v1699
          %v1716 = vcvt.s32.f32 %v1700
          %v1717 = vcvt.s32.f32 %v1701
          %v1718 = vcvt.s32.f32 %v1702
          %vm1719 = vcmask 130048
          %v1721 = vsel %vm1719, %v1703, 0
          %v1724 = vsel %vm1719, %v1704, 0
          %v1727 = vsel %vm1719, %v1705, 0
          %v1730 = vsel %vm1719, %v1706, 0
          %v1733 = vsel %vm1719, %v1707, 0
          %v1736 = vsel %vm1719, %v1708, 0
          %v1739 = vsel %vm1719, %v1709, 0
          %v1742 = vsel %vm1719, %v1710, 0
          %v1745 = vsel %vm1719, %v1711, 0
          %v1748 = vsel %vm1719, %v1712, 0
          %v1751 = vsel %vm1719, %v1713, 0
          %v1754 = vsel %vm1719, %v1714, 0
          %v1757 = vsel %vm1719, %v1715, 0
          %v1760 = vsel %vm1719, %v1716, 0
          %v1763 = vsel %vm1719, %v1717, 0
          %v1766 = vsel %vm1719, %v1718, 0
          %1768 = vmatprep.subr.mxu0 0.0
          %1769 = vmatpush1.msra.mxu0 %v1461
          %1770 = vmatprep.subr.mxu0 0.0
          %1771 = vmatpush1.msra.mxu0 %v1466
          %1772 = vmatprep.subr.mxu0 0.0
          %1773 = vmatpush1.msra.mxu0 0.0
          %1774 = vmatprep.subr.mxu0 0.0
          %1775 = vmatpush1.msra.mxu0 0.0
          %1776 = vmatprep.subr.mxu0 0.0
          %1777 = vmatpush1.msra.mxu0 0.0
          %1778 = vmatprep.subr.mxu0 0.0
          %1779 = vmatpush1.msra.mxu0 0.0
          %1780 = vmatprep.subr.mxu0 0.0
          %1781 = vmatpush1.msra.mxu0 0.0
          %1782 = vmatprep.subr.mxu0 0.0
          %1783 = vmatpush1.msra.mxu0 0.0
          %1784 = vmatprep.subr.mxu0 0.0
          %1785 = vmatpush1.msra.mxu0 0.0
          %1786 = vmatprep.subr.mxu0 0.0
          %1787 = vmatpush1.msra.mxu0 0.0
          %1788 = vmatprep.subr.mxu0 0.0
          %1789 = vmatpush1.msra.mxu0 0.0
          %1790 = vmatprep.subr.mxu0 0.0
          %1791 = vmatpush1.msra.mxu0 0.0
          %1792 = vmatprep.subr.mxu0 0.0
          %1793 = vmatpush1.msra.mxu0 0.0
          %1794 = vmatprep.subr.mxu0 0.0
          %1795 = vmatpush1.msra.mxu0 0.0
          %1796 = vmatprep.subr.mxu0 0.0
          %1797 = vmatpush1.msra.mxu0 0.0
          %1798 = vmatprep.subr.mxu0 0.0
          %1799 = vmatpush1.msra.mxu0 0.0
          %1800 = vmatprep.subr.mxu0 0.0
          %1801 = vmatpush1.msra.mxu0 0.0
          %1802 = vmatprep.subr.mxu0 0.0
          %1803 = vmatpush1.msra.mxu0 0.0
          %1804 = vmatprep.subr.mxu0 0.0
          %1805 = vmatpush1.msra.mxu0 0.0
          %1806 = vmatprep.subr.mxu0 0.0
          %1807 = vmatpush1.msra.mxu0 0.0
          %1808 = vmatprep.subr.mxu0 0.0
          %1809 = vmatpush1.msra.mxu0 0.0
          %1810 = vmatprep.subr.mxu0 0.0
          %1811 = vmatpush1.msra.mxu0 0.0
          %1812 = vmatprep.subr.mxu0 0.0
          %1813 = vmatpush1.msra.mxu0 0.0
          %1814 = vmatprep.subr.mxu0 0.0
          %1815 = vmatpush1.msra.mxu0 0.0
          %1816 = vmatprep.subr.mxu0 0.0
          %1817 = vmatpush1.msra.mxu0 0.0
          %1818 = vmatprep.subr.mxu0 0.0
          %1819 = vmatpush1.msra.mxu0 0.0
          %1820 = vmatprep.subr.mxu0 0.0
          %1821 = vmatpush1.msra.mxu0 0.0
          %1822 = vmatprep.subr.mxu0 0.0
          %1823 = vmatpush1.msra.mxu0 0.0
          %1824 = vmatprep.subr.mxu0 0.0
          %1825 = vmatpush1.msra.mxu0 0.0
          %1826 = vmatprep.subr.mxu0 0.0
          %1827 = vmatpush1.msra.mxu0 0.0
          %1828 = vmatprep.subr.mxu0 0.0
          %1829 = vmatpush1.msra.mxu0 0.0
          %1830 = vmatprep.subr.mxu0 0.0
          %1831 = vmatpush1.msra.mxu0 0.0
          %1832 = vmatprep.mubr.f32.mxu0 0.0
          %1833 = vmatmul.mubr.f32.gmra.mrb[0].mxu0 %v1721
          %v1834 = vpop.f32.mrb[0].mxu0
          %v1835 = vadd.f32 0.0, %v1834
          %v1836 = vpop.f32.mrb[0].mxu0
          %1837 = vmatprep.mubr.f32.mxu0 0.0
          %1838 = vmatmul.mubr.f32.gmra.mrb[0].mxu0 %v1724
          %v1839 = vpop.f32.mrb[0].mxu0
          %v1840 = vadd.f32 0.0, %v1839
          %v1841 = vpop.f32.mrb[0].mxu0
          %1842 = vmatprep.mubr.f32.mxu0 0.0
          %1843 = vmatmul.mubr.f32.gmra.mrb[0].mxu0 %v1727
          %v1844 = vpop.f32.mrb[0].mxu0
          %v1845 = vadd.f32 0.0, %v1844
          %v1846 = vpop.f32.mrb[0].mxu0
          %1847 = vmatprep.mubr.f32.mxu0 0.0
          %1848 = vmatmul.mubr.f32.gmra.mrb[0].mxu0 %v1730
          %v1849 = vpop.f32.mrb[0].mxu0
          %v1850 = vadd.f32 0.0, %v1849
          %v1851 = vpop.f32.mrb[0].mxu0
          %1852 = vmatprep.mubr.f32.mxu0 0.0
          %1853 = vmatmul.mubr.f32.gmra.mrb[0].mxu0 %v1733
          %v1854 = vpop.f32.mrb[0].mxu0
          %v1855 = vadd.f32 0.0, %v1854
          %v1856 = vpop.f32.mrb[0].mxu0
          %1857 = vmatprep.mubr.f32.mxu0 0.0
          %1858 = vmatmul.mubr.f32.gmra.mrb[0].mxu0 %v1736
          %v1859 = vpop.f32.mrb[0].mxu0
          %v1860 = vadd.f32 0.0, %v1859
          %v1861 = vpop.f32.mrb[0].mxu0
          %1862 = vmatprep.mubr.f32.mxu0 0.0
          %1863 = vmatmul.mubr.f32.gmra.mrb[0].mxu0 %v1739
          %v1864 = vpop.f32.mrb[0].mxu0
          %v1865 = vadd.f32 0.0, %v1864
          %v1866 = vpop.f32.mrb[0].mxu0
          %1867 = vmatprep.mubr.f32.mxu0 0.0
          %1868 = vmatmul.mubr.f32.gmra.mrb[0].mxu0 %v1742
          %v1869 = vpop.f32.mrb[0].mxu0
          %v1870 = vadd.f32 0.0, %v1869
          %v1871 = vpop.f32.mrb[0].mxu0
          %1872 = vmatprep.mubr.f32.mxu0 0.0
          %1873 = vmatmul.mubr.f32.gmra.mrb[0].mxu0 %v1745
          %v1874 = vpop.f32.mrb[0].mxu0
          %v1875 = vadd.f32 0.0, %v1874
          %v1876 = vpop.f32.mrb[0].mxu0
          %1877 = vmatprep.mubr.f32.mxu0 0.0
          %1878 = vmatmul.mubr.f32.gmra.mrb[0].mxu0 %v1748
          %v1879 = vpop.f32.mrb[0].mxu0
          %v1880 = vadd.f32 0.0, %v1879
          %v1881 = vpop.f32.mrb[0].mxu0
          %1882 = vmatprep.mubr.f32.mxu0 0.0
          %1883 = vmatmul.mubr.f32.gmra.mrb[0].mxu0 %v1751
          %v1884 = vpop.f32.mrb[0].mxu0
          %v1885 = vadd.f32 0.0, %v1884
          %v1886 = vpop.f32.mrb[0].mxu0
          %1887 = vmatprep.mubr.f32.mxu0 0.0
          %1888 = vmatmul.mubr.f32.gmra.mrb[0].mxu0 %v1754
          %v1889 = vpop.f32.mrb[0].mxu0
          %v1890 = vadd.f32 0.0, %v1889
          %v1891 = vpop.f32.mrb[0].mxu0
          %1892 = vmatprep.mubr.f32.mxu0 0.0
          %1893 = vmatmul.mubr.f32.gmra.mrb[0].mxu0 %v1757
          %v1894 = vpop.f32.mrb[0].mxu0
          %v1895 = vadd.f32 0.0, %v1894
          %v1896 = vpop.f32.mrb[0].mxu0
          %1897 = vmatprep.mubr.f32.mxu0 0.0
          %1898 = vmatmul.mubr.f32.gmra.mrb[0].mxu0 %v1760
          %v1899 = vpop.f32.mrb[0].mxu0
          %v1900 = vadd.f32 0.0, %v1899
          %v1901 = vpop.f32.mrb[0].mxu0
          %1902 = vmatprep.mubr.f32.mxu0 0.0
          %1903 = vmatmul.mubr.f32.gmra.mrb[0].mxu0 %v1763
          %v1904 = vpop.f32.mrb[0].mxu0
          %v1905 = vadd.f32 0.0, %v1904
          %v1906 = vpop.f32.mrb[0].mxu0
          %1907 = vmatprep.mubr.f32.mxu0 0.0
          %1908 = vmatmul.mubr.f32.gmra.mrb[0].mxu0 %v1766
          %v1909 = vpop.f32.mrb[0].mxu0
          %v1910 = vadd.f32 0.0, %v1909
          %v1911 = vpop.f32.mrb[0].mxu0
          %1912 = vdwg.mxu0
          %v1914 = vsel %vm1719, %v1590, 0
          %v1917 = vsel %vm1719, %v1591, 0
          %v1920 = vsel %vm1719, %v1592, 0
          %v1923 = vsel %vm1719, %v1593, 0
          %v1926 = vsel %vm1719, %v1594, 0
          %v1929 = vsel %vm1719, %v1595, 0
          %v1932 = vsel %vm1719, %v1596, 0
          %v1935 = vsel %vm1719, %v1597, 0
          %v1938 = vsel %vm1719, %v1598, 0
          %v1941 = vsel %vm1719, %v1599, 0
          %v1944 = vsel %vm1719, %v1600, 0
          %v1947 = vsel %vm1719, %v1601, 0
          %v1950 = vsel %vm1719, %v1602, 0
          %v1953 = vsel %vm1719, %v1603, 0
          %v1956 = vsel %vm1719, %v1604, 0
          %v1959 = vsel %vm1719, %v1605, 0
          %1961 = vmatprep.subr.mxu0 0.0
          %1962 = vmatpush1.msra.mxu0 %v1370
          %1963 = vmatprep.subr.mxu0 0.0
          %1964 = vmatpush1.msra.mxu0 %v1375
          %1965 = vmatprep.subr.mxu0 0.0
          %1966 = vmatpush1.msra.mxu0 0.0
          %1967 = vmatprep.subr.mxu0 0.0
          %1968 = vmatpush1.msra.mxu0 0.0
          %1969 = vmatprep.subr.mxu0 0.0
          %1970 = vmatpush1.msra.mxu0 0.0
          %1971 = vmatprep.subr.mxu0 0.0
          %1972 = vmatpush1.msra.mxu0 0.0
          %1973 = vmatprep.subr.mxu0 0.0
          %1974 = vmatpush1.msra.mxu0 0.0
          %1975 = vmatprep.subr.mxu0 0.0
          %1976 = vmatpush1.msra.mxu0 0.0
          %1977 = vmatprep.subr.mxu0 0.0
          %1978 = vmatpush1.msra.mxu0 0.0
          %1979 = vmatprep.subr.mxu0 0.0
          %1980 = vmatpush1.msra.mxu0 0.0
          %1981 = vmatprep.subr.mxu0 0.0
          %1982 = vmatpush1.msra.mxu0 0.0
          %1983 = vmatprep.subr.mxu0 0.0
          %1984 = vmatpush1.msra.mxu0 0.0
          %1985 = vmatprep.subr.mxu0 0.0
          %1986 = vmatpush1.msra.mxu0 0.0
          %1987 = vmatprep.subr.mxu0 0.0
          %1988 = vmatpush1.msra.mxu0 0.0
          %1989 = vmatprep.subr.mxu0 0.0
          %1990 = vmatpush1.msra.mxu0 0.0
          %1991 = vmatprep.subr.mxu0 0.0
          %1992 = vmatpush1.msra.mxu0 0.0
          %1993 = vmatprep.subr.mxu0 0.0
          %1994 = vmatpush1.msra.mxu0 0.0
          %1995 = vmatprep.subr.mxu0 0.0
          %1996 = vmatpush1.msra.mxu0 0.0
          %1997 = vmatprep.subr.mxu0 0.0
          %1998 = vmatpush1.msra.mxu0 0.0
          %1999 = vmatprep.subr.mxu0 0.0
          %2000 = vmatpush1.msra.mxu0 0.0
          %2001 = vmatprep.subr.mxu0 0.0
          %2002 = vmatpush1.msra.mxu0 0.0
          %2003 = vmatprep.subr.mxu0 0.0
          %2004 = vmatpush1.msra.mxu0 0.0
          %2005 = vmatprep.subr.mxu0 0.0
          %2006 = vmatpush1.msra.mxu0 0.0
          %2007 = vmatprep.subr.mxu0 0.0
          %2008 = vmatpush1.msra.mxu0 0.0
          %2009 = vmatprep.subr.mxu0 0.0
          %2010 = vmatpush1.msra.mxu0 0.0
          %2011 = vmatprep.subr.mxu0 0.0
          %2012 = vmatpush1.msra.mxu0 0.0
          %2013 = vmatprep.subr.mxu0 0.0
          %2014 = vmatpush1.msra.mxu0 0.0
          %2015 = vmatprep.subr.mxu0 0.0
          %2016 = vmatpush1.msra.mxu0 0.0
          %2017 = vmatprep.subr.mxu0 0.0
          %2018 = vmatpush1.msra.mxu0 0.0
          %2019 = vmatprep.subr.mxu0 0.0
          %2020 = vmatpush1.msra.mxu0 0.0
          %2021 = vmatprep.subr.mxu0 0.0
          %2022 = vmatpush1.msra.mxu0 0.0
          %2023 = vmatprep.subr.mxu0 0.0
          %2024 = vmatpush1.msra.mxu0 0.0
          %2025 = vmatprep.mubr.f32.mxu0 0.0
          %2026 = vmatmul.mubr.f32.gmra.mrb[0].mxu0 %v1914
          %v2027 = vpop.f32.mrb[0].mxu0
          %v2028 = vadd.f32 %v1835, %v2027
          %v2029 = vpop.f32.mrb[0].mxu0
          %2030 = vmatprep.mubr.f32.mxu0 0.0
          %2031 = vmatmul.mubr.f32.gmra.mrb[0].mxu0 %v1917
          %v2032 = vpop.f32.mrb[0].mxu0
          %v2033 = vadd.f32 %v1840, %v2032
          %v2034 = vpop.f32.mrb[0].mxu0
          %2035 = vmatprep.mubr.f32.mxu0 0.0
          %2036 = vmatmul.mubr.f32.gmra.mrb[0].mxu0 %v1920
          %v2037 = vpop.f32.mrb[0].mxu0
          %v2038 = vadd.f32 %v1845, %v2037
          %v2039 = vpop.f32.mrb[0].mxu0
          %2040 = vmatprep.mubr.f32.mxu0 0.0
          %2041 = vmatmul.mubr.f32.gmra.mrb[0].mxu0 %v1923
          %v2042 = vpop.f32.mrb[0].mxu0
          %v2043 = vadd.f32 %v1850, %v2042
          %v2044 = vpop.f32.mrb[0].mxu0
          %2045 = vmatprep.mubr.f32.mxu0 0.0
          %2046 = vmatmul.mubr.f32.gmra.mrb[0].mxu0 %v1926
          %v2047 = vpop.f32.mrb[0].mxu0
          %v2048 = vadd.f32 %v1855, %v2047
          %v2049 = vpop.f32.mrb[0].mxu0
          %2050 = vmatprep.mubr.f32.mxu0 0.0
          %2051 = vmatmul.mubr.f32.gmra.mrb[0].mxu0 %v1929
          %v2052 = vpop.f32.mrb[0].mxu0
          %v2053 = vadd.f32 %v1860, %v2052
          %v2054 = vpop.f32.mrb[0].mxu0
          %2055 = vmatprep.mubr.f32.mxu0 0.0
          %2056 = vmatmul.mubr.f32.gmra.mrb[0].mxu0 %v1932
          %v2057 = vpop.f32.mrb[0].mxu0
          %v2058 = vadd.f32 %v1865, %v2057
          %v2059 = vpop.f32.mrb[0].mxu0
          %2060 = vmatprep.mubr.f32.mxu0 0.0
          %2061 = vmatmul.mubr.f32.gmra.mrb[0].mxu0 %v1935
          %v2062 = vpop.f32.mrb[0].mxu0
          %v2063 = vadd.f32 %v1870, %v2062
          %v2064 = vpop.f32.mrb[0].mxu0
          %2065 = vmatprep.mubr.f32.mxu0 0.0
          %2066 = vmatmul.mubr.f32.gmra.mrb[0].mxu0 %v1938
          %v2067 = vpop.f32.mrb[0].mxu0
          %v2068 = vadd.f32 %v1875, %v2067
          %v2069 = vpop.f32.mrb[0].mxu0
          %2070 = vmatprep.mubr.f32.mxu0 0.0
          %2071 = vmatmul.mubr.f32.gmra.mrb[0].mxu0 %v1941
          %v2072 = vpop.f32.mrb[0].mxu0
          %v2073 = vadd.f32 %v1880, %v2072
          %v2074 = vpop.f32.mrb[0].mxu0
          %2075 = vmatprep.mubr.f32.mxu0 0.0
          %2076 = vmatmul.mubr.f32.gmra.mrb[0].mxu0 %v1944
          %v2077 = vpop.f32.mrb[0].mxu0
          %v2078 = vadd.f32 %v1885, %v2077
          %v2079 = vpop.f32.mrb[0].mxu0
          %2080 = vmatprep.mubr.f32.mxu0 0.0
          %2081 = vmatmul.mubr.f32.gmra.mrb[0].mxu0 %v1947
          %v2082 = vpop.f32.mrb[0].mxu0
          %v2083 = vadd.f32 %v1890, %v2082
          %v2084 = vpop.f32.mrb[0].mxu0
          %2085 = vmatprep.mubr.f32.mxu0 0.0
          %2086 = vmatmul.mubr.f32.gmra.mrb[0].mxu0 %v1950
          %v2087 = vpop.f32.mrb[0].mxu0
          %v2088 = vadd.f32 %v1895, %v2087
          %v2089 = vpop.f32.mrb[0].mxu0
          %2090 = vmatprep.mubr.f32.mxu0 0.0
          %2091 = vmatmul.mubr.f32.gmra.mrb[0].mxu0 %v1953
          %v2092 = vpop.f32.mrb[0].mxu0
          %v2093 = vadd.f32 %v1900, %v2092
          %v2094 = vpop.f32.mrb[0].mxu0
          %2095 = vmatprep.mubr.f32.mxu0 0.0
          %2096 = vmatmul.mubr.f32.gmra.mrb[0].mxu0 %v1956
          %v2097 = vpop.f32.mrb[0].mxu0
          %v2098 = vadd.f32 %v1905, %v2097
          %v2099 = vpop.f32.mrb[0].mxu0
          %2100 = vmatprep.mubr.f32.mxu0 0.0
          %2101 = vmatmul.mubr.f32.gmra.mrb[0].mxu0 %v1959
          %v2102 = vpop.f32.mrb[0].mxu0
          %v2103 = vadd.f32 %v1910, %v2102
          %v2104 = vpop.f32.mrb[0].mxu0
          %2105 = vdwg.mxu0
          %v2106 = vld [vmem:[#allocation8] sm:$0xff]
          %v2107 = vld [vmem:[#allocation8 + $0x8] sm:$0xff]
          %v2108 = vld [vmem:[#allocation8 + $0x10] sm:$0xff]
          %v2109 = vld [vmem:[#allocation8 + $0x18] sm:$0xff]
          %v2110 = vld [vmem:[#allocation8 + $0x20] sm:$0xff]
          %v2111 = vld [vmem:[#allocation8 + $0x28] sm:$0xff]
          %v2112 = vld [vmem:[#allocation8 + $0x30] sm:$0xff]
          %v2113 = vld [vmem:[#allocation8 + $0x38] sm:$0xff]
          %v2114 = vld [vmem:[#allocation8 + $0x40] sm:$0xff]
          %v2115 = vld [vmem:[#allocation8 + $0x48] sm:$0xff]
          %v2116 = vld [vmem:[#allocation8 + $0x50] sm:$0xff]
          %v2117 = vld [vmem:[#allocation8 + $0x58] sm:$0xff]
          %v2118 = vld [vmem:[#allocation8 + $0x60] sm:$0xff]
          %v2119 = vld [vmem:[#allocation8 + $0x68] sm:$0xff]
          %v2120 = vld [vmem:[#allocation8 + $0x70] sm:$0xff]
          %v2121 = vld [vmem:[#allocation8 + $0x78] sm:$0xff]
          %2122 = vmatprep.subr.mxu0 0.0
          %2123 = vmatpush1.msra.mxu0 %v2106
          %2124 = vmatprep.subr.mxu0 0.0
          %2125 = vmatpush1.msra.mxu0 %v2107
          %2126 = vmatprep.subr.mxu0 0.0
          %2127 = vmatpush1.msra.mxu0 %v2108
          %2128 = vmatprep.subr.mxu0 0.0
          %2129 = vmatpush1.msra.mxu0 %v2109
          %2130 = vmatprep.subr.mxu0 0.0
          %2131 = vmatpush1.msra.mxu0 %v2110
          %2132 = vmatprep.subr.mxu0 0.0
          %2133 = vmatpush1.msra.mxu0 %v2111
          %2134 = vmatprep.subr.mxu0 0.0
          %2135 = vmatpush1.msra.mxu0 %v2112
          %2136 = vmatprep.subr.mxu0 0.0
          %2137 = vmatpush1.msra.mxu0 %v2113
          %2138 = vmatprep.subr.mxu0 0.0
          %2139 = vmatpush1.msra.mxu0 %v2114
          %2140 = vmatprep.subr.mxu0 0.0
          %2141 = vmatpush1.msra.mxu0 %v2115
          %2142 = vmatprep.subr.mxu0 0.0
          %2143 = vmatpush1.msra.mxu0 %v2116
          %2144 = vmatprep.subr.mxu0 0.0
          %2145 = vmatpush1.msra.mxu0 %v2117
          %2146 = vmatprep.subr.mxu0 0.0
          %2147 = vmatpush1.msra.mxu0 %v2118
          %2148 = vmatprep.subr.mxu0 0.0
          %2149 = vmatpush1.msra.mxu0 %v2119
          %2150 = vmatprep.subr.mxu0 0.0
          %2151 = vmatpush1.msra.mxu0 %v2120
          %2152 = vmatprep.subr.mxu0 0.0
          %2153 = vmatpush1.msra.mxu0 %v2121
          %2154 = vmatprep.subr.mxu0 0.0
          %2155 = vmatpush1.msra.mxu0 0.0
          %2156 = vmatprep.subr.mxu0 0.0
          %2157 = vmatpush1.msra.mxu0 0.0
          %2158 = vmatprep.subr.mxu0 0.0
          %2159 = vmatpush1.msra.mxu0 0.0
          %2160 = vmatprep.subr.mxu0 0.0
          %2161 = vmatpush1.msra.mxu0 0.0
          %2162 = vmatprep.subr.mxu0 0.0
          %2163 = vmatpush1.msra.mxu0 0.0
          %2164 = vmatprep.subr.mxu0 0.0
          %2165 = vmatpush1.msra.mxu0 0.0
          %2166 = vmatprep.subr.mxu0 0.0
          %2167 = vmatpush1.msra.mxu0 0.0
          %2168 = vmatprep.subr.mxu0 0.0
          %2169 = vmatpush1.msra.mxu0 0.0
          %2170 = vmatprep.subr.mxu0 0.0
          %2171 = vmatpush1.msra.mxu0 0.0
          %2172 = vmatprep.subr.mxu0 0.0
          %2173 = vmatpush1.msra.mxu0 0.0
          %2174 = vmatprep.subr.mxu0 0.0
          %2175 = vmatpush1.msra.mxu0 0.0
          %2176 = vmatprep.subr.mxu0 0.0
          %2177 = vmatpush1.msra.mxu0 0.0
          %2178 = vmatprep.subr.mxu0 0.0
          %2179 = vmatpush1.msra.mxu0 0.0
          %2180 = vmatprep.subr.mxu0 0.0
          %2181 = vmatpush1.msra.mxu0 0.0
          %2182 = vmatprep.subr.mxu0 0.0
          %2183 = vmatpush1.msra.mxu0 0.0
          %2184 = vmatprep.subr.mxu0 0.0
          %2185 = vmatpush1.msra.mxu0 0.0
          %2186 = vmatprep.mubr.f32.mxu0 0.0
          %2187 = vmatmul.mubr.f32.gmra.mrb[0].mxu0 %v1477
          %v2188 = vpop.f32.mrb[0].mxu0
          %v2189 = vadd.f32 0.0, %v2188
          %v2190 = vpop.f32.mrb[0].mxu0
          %2191 = vmatprep.mubr.f32.mxu0 0.0
          %2192 = vmatmul.mubr.f32.gmra.mrb[0].mxu0 %v1478
          %v2193 = vpop.f32.mrb[0].mxu0
          %v2194 = vadd.f32 0.0, %v2193
          %v2195 = vpop.f32.mrb[0].mxu0
          %2196 = vmatprep.mubr.f32.mxu0 0.0
          %2197 = vmatmul.mubr.f32.gmra.mrb[0].mxu0 %v1479
          %v2198 = vpop.f32.mrb[0].mxu0
          %v2199 = vadd.f32 0.0, %v2198
          %v2200 = vpop.f32.mrb[0].mxu0
          %2201 = vmatprep.mubr.f32.mxu0 0.0
          %2202 = vmatmul.mubr.f32.gmra.mrb[0].mxu0 %v1480
          %v2203 = vpop.f32.mrb[0].mxu0
          %v2204 = vadd.f32 0.0, %v2203
          %v2205 = vpop.f32.mrb[0].mxu0
          %2206 = vmatprep.mubr.f32.mxu0 0.0
          %2207 = vmatmul.mubr.f32.gmra.mrb[0].mxu0 %v1481
          %v2208 = vpop.f32.mrb[0].mxu0
          %v2209 = vadd.f32 0.0, %v2208
          %v2210 = vpop.f32.mrb[0].mxu0
          %2211 = vmatprep.mubr.f32.mxu0 0.0
          %2212 = vmatmul.mubr.f32.gmra.mrb[0].mxu0 %v1482
          %v2213 = vpop.f32.mrb[0].mxu0
          %v2214 = vadd.f32 0.0, %v2213
          %v2215 = vpop.f32.mrb[0].mxu0
          %2216 = vmatprep.mubr.f32.mxu0 0.0
          %2217 = vmatmul.mubr.f32.gmra.mrb[0].mxu0 %v1483
          %v2218 = vpop.f32.mrb[0].mxu0
          %v2219 = vadd.f32 0.0, %v2218
          %v2220 = vpop.f32.mrb[0].mxu0
          %2221 = vmatprep.mubr.f32.mxu0 0.0
          %2222 = vmatmul.mubr.f32.gmra.mrb[0].mxu0 %v1484
          %v2223 = vpop.f32.mrb[0].mxu0
          %v2224 = vadd.f32 0.0, %v2223
          %v2225 = vpop.f32.mrb[0].mxu0
          %2226 = vmatprep.mubr.f32.mxu0 0.0
          %2227 = vmatmul.mubr.f32.gmra.mrb[0].mxu0 %v1485
          %v2228 = vpop.f32.mrb[0].mxu0
          %v2229 = vadd.f32 0.0, %v2228
          %v2230 = vpop.f32.mrb[0].mxu0
          %2231 = vmatprep.mubr.f32.mxu0 0.0
          %2232 = vmatmul.mubr.f32.gmra.mrb[0].mxu0 %v1486
          %v2233 = vpop.f32.mrb[0].mxu0
          %v2234 = vadd.f32 0.0, %v2233
          %v2235 = vpop.f32.mrb[0].mxu0
          %2236 = vmatprep.mubr.f32.mxu0 0.0
          %2237 = vmatmul.mubr.f32.gmra.mrb[0].mxu0 %v1487
          %v2238 = vpop.f32.mrb[0].mxu0
          %v2239 = vadd.f32 0.0, %v2238
          %v2240 = vpop.f32.mrb[0].mxu0
          %2241 = vmatprep.mubr.f32.mxu0 0.0
          %2242 = vmatmul.mubr.f32.gmra.mrb[0].mxu0 %v1488
          %v2243 = vpop.f32.mrb[0].mxu0
          %v2244 = vadd.f32 0.0, %v2243
          %v2245 = vpop.f32.mrb[0].mxu0
          %2246 = vmatprep.mubr.f32.mxu0 0.0
          %2247 = vmatmul.mubr.f32.gmra.mrb[0].mxu0 %v1489
          %v2248 = vpop.f32.mrb[0].mxu0
          %v2249 = vadd.f32 0.0, %v2248
          %v2250 = vpop.f32.mrb[0].mxu0
          %2251 = vmatprep.mubr.f32.mxu0 0.0
          %2252 = vmatmul.mubr.f32.gmra.mrb[0].mxu0 %v1490
          %v2253 = vpop.f32.mrb[0].mxu0
          %v2254 = vadd.f32 0.0, %v2253
          %v2255 = vpop.f32.mrb[0].mxu0
          %2256 = vmatprep.mubr.f32.mxu0 0.0
          %2257 = vmatmul.mubr.f32.gmra.mrb[0].mxu0 %v1491
          %v2258 = vpop.f32.mrb[0].mxu0
          %v2259 = vadd.f32 0.0, %v2258
          %v2260 = vpop.f32.mrb[0].mxu0
          %2261 = vmatprep.mubr.f32.mxu0 0.0
          %2262 = vmatmul.mubr.f32.gmra.mrb[0].mxu0 %v1492
          %v2263 = vpop.f32.mrb[0].mxu0
          %v2264 = vadd.f32 0.0, %v2263
          %v2265 = vpop.f32.mrb[0].mxu0
          %2266 = vdwg.mxu0
          %v2267 = vadd.f32 %v2028, %v2189
          %v2268 = vadd.f32 %v2033, %v2194
          %v2269 = vadd.f32 %v2038, %v2199
          %v2270 = vadd.f32 %v2043, %v2204
          %v2271 = vadd.f32 %v2048, %v2209
          %v2272 = vadd.f32 %v2053, %v2214
          %v2273 = vadd.f32 %v2058, %v2219
          %v2274 = vadd.f32 %v2063, %v2224
          %v2275 = vadd.f32 %v2068, %v2229
          %v2276 = vadd.f32 %v2073, %v2234
          %v2277 = vadd.f32 %v2078, %v2239
          %v2278 = vadd.f32 %v2083, %v2244
          %v2279 = vadd.f32 %v2088, %v2249
          %v2280 = vadd.f32 %v2093, %v2254
          %v2281 = vadd.f32 %v2098, %v2259
          %v2282 = vadd.f32 %v2103, %v2264
          %v2283 = vld [vmem:[%s11] sm:$0x1]
          %v2285 = vlaneseq
          %v2286 = vshrl.u32 %v2285, 7
          %v2287 = vsub.s32 0, %v2286
          %v2288 = vrot.slane %v2283, %v2287
          %v2290 = vadd.f32 %v2267, %v2288
          %v2291 = vadd.f32 %v2268, %v2288
          %v2292 = vadd.f32 %v2269, %v2288
          %v2293 = vadd.f32 %v2270, %v2288
          %v2294 = vadd.f32 %v2271, %v2288
          %v2295 = vadd.f32 %v2272, %v2288
          %v2296 = vadd.f32 %v2273, %v2288
          %v2297 = vadd.f32 %v2274, %v2288
          %v2298 = vadd.f32 %v2275, %v2288
          %v2299 = vadd.f32 %v2276, %v2288
          %v2300 = vadd.f32 %v2277, %v2288
          %v2301 = vadd.f32 %v2278, %v2288
          %v2302 = vadd.f32 %v2279, %v2288
          %v2303 = vadd.f32 %v2280, %v2288
          %v2304 = vadd.f32 %v2281, %v2288
          %v2305 = vadd.f32 %v2282, %v2288
          %2306 = vst [vmem:[%s1476] sm:$0xff] %v2290
          %2307 = vst [vmem:[%s1476 + $0x8] sm:$0xff] %v2291
          %2308 = vst [vmem:[%s1476 + $0x10] sm:$0xff] %v2292
          %2309 = vst [vmem:[%s1476 + $0x18] sm:$0xff] %v2293
          %2310 = vst [vmem:[%s1476 + $0x20] sm:$0xff] %v2294
          %2311 = vst [vmem:[%s1476 + $0x28] sm:$0xff] %v2295
          %2312 = vst [vmem:[%s1476 + $0x30] sm:$0xff] %v2296
          %2313 = vst [vmem:[%s1476 + $0x38] sm:$0xff] %v2297
          %2314 = vst [vmem:[%s1476 + $0x40] sm:$0xff] %v2298
          %2315 = vst [vmem:[%s1476 + $0x48] sm:$0xff] %v2299
          %2316 = vst [vmem:[%s1476 + $0x50] sm:$0xff] %v2300
          %2317 = vst [vmem:[%s1476 + $0x58] sm:$0xff] %v2301
          %2318 = vst [vmem:[%s1476 + $0x60] sm:$0xff] %v2302
          %2319 = vst [vmem:[%s1476 + $0x68] sm:$0xff] %v2303
          %2320 = vst [vmem:[%s1476 + $0x70] sm:$0xff] %v2304
          %2321 = vst [vmem:[%s1476 + $0x78] sm:$0xff] %v2305
          %v2322 = vld [vmem:[%s12] sm:$0x1]
          %v2324 = vlaneseq
          %v2325 = vshrl.u32 %v2324, 7
          %v2326 = vsub.s32 0, %v2325
          %v2327 = vrot.slane %v2322, %v2326
          %v2329 = vmul.f32 %v2290, %v2327
          %v2330 = vmul.f32 %v2291, %v2327
          %v2331 = vmul.f32 %v2292, %v2327
          %v2332 = vmul.f32 %v2293, %v2327
          %v2333 = vmul.f32 %v2294, %v2327
          %v2334 = vmul.f32 %v2295, %v2327
          %v2335 = vmul.f32 %v2296, %v2327
          %v2336 = vmul.f32 %v2297, %v2327
          %v2337 = vmul.f32 %v2298, %v2327
          %v2338 = vmul.f32 %v2299, %v2327
          %v2339 = vmul.f32 %v2300, %v2327
          %v2340 = vmul.f32 %v2301, %v2327
          %v2341 = vmul.f32 %v2302, %v2327
          %v2342 = vmul.f32 %v2303, %v2327
          %v2343 = vmul.f32 %v2304, %v2327
          %v2344 = vmul.f32 %v2305, %v2327
          %2345 = vadd.xlane.f32.xlu0 %v2329
          %v2346 = vpop.xlane.xlu0 %2345
          %2347 = vadd.xlane.f32.xlu0 %v2330
          %v2348 = vpop.xlane.xlu0 %2347
          %2349 = vadd.xlane.f32.xlu0 %v2331
          %v2350 = vpop.xlane.xlu0 %2349
          %2351 = vadd.xlane.f32.xlu0 %v2332
          %v2352 = vpop.xlane.xlu0 %2351
          %2353 = vadd.xlane.f32.xlu0 %v2333
          %v2354 = vpop.xlane.xlu0 %2353
          %2355 = vadd.xlane.f32.xlu0 %v2334
          %v2356 = vpop.xlane.xlu0 %2355
          %2357 = vadd.xlane.f32.xlu0 %v2335
          %v2358 = vpop.xlane.xlu0 %2357
          %2359 = vadd.xlane.f32.xlu0 %v2336
          %v2360 = vpop.xlane.xlu0 %2359
          %2361 = vadd.xlane.f32.xlu0 %v2337
          %v2362 = vpop.xlane.xlu0 %2361
          %2363 = vadd.xlane.f32.xlu0 %v2338
          %v2364 = vpop.xlane.xlu0 %2363
          %2365 = vadd.xlane.f32.xlu0 %v2339
          %v2366 = vpop.xlane.xlu0 %2365
          %2367 = vadd.xlane.f32.xlu0 %v2340
          %v2368 = vpop.xlane.xlu0 %2367
          %2369 = vadd.xlane.f32.xlu0 %v2341
          %v2370 = vpop.xlane.xlu0 %2369
          %2371 = vadd.xlane.f32.xlu0 %v2342
          %v2372 = vpop.xlane.xlu0 %2371
          %2373 = vadd.xlane.f32.xlu0 %v2343
          %v2374 = vpop.xlane.xlu0 %2373
          %2375 = vadd.xlane.f32.xlu0 %v2344
          %v2376 = vpop.xlane.xlu0 %2375
          %v2377 = vld [vmem:[#allocation4] sm:$0x1]
          %v2379 = vlaneseq
          %v2380 = vshrl.u32 %v2379, 7
          %v2381 = vsub.s32 0, %v2380
          %v2382 = vrot.slane %v2377, %v2381
          %v2384 = vadd.f32 %v2346, %v2382
          %v2385 = vadd.f32 %v2348, %v2382
          %v2386 = vadd.f32 %v2350, %v2382
          %v2387 = vadd.f32 %v2352, %v2382
          %v2388 = vadd.f32 %v2354, %v2382
          %v2389 = vadd.f32 %v2356, %v2382
          %v2390 = vadd.f32 %v2358, %v2382
          %v2391 = vadd.f32 %v2360, %v2382
          %v2392 = vadd.f32 %v2362, %v2382
          %v2393 = vadd.f32 %v2364, %v2382
          %v2394 = vadd.f32 %v2366, %v2382
          %v2395 = vadd.f32 %v2368, %v2382
          %v2396 = vadd.f32 %v2370, %v2382
          %v2397 = vadd.f32 %v2372, %v2382
          %v2398 = vadd.f32 %v2374, %v2382
          %v2399 = vadd.f32 %v2376, %v2382
          %v2400 = vsub.f32 0.0, %v2384
          %v2401 = vsub.f32 0.0, %v2385
          %v2402 = vsub.f32 0.0, %v2386
          %v2403 = vsub.f32 0.0, %v2387
          %v2404 = vsub.f32 0.0, %v2388
          %v2405 = vsub.f32 0.0, %v2389
          %v2406 = vsub.f32 0.0, %v2390
          %v2407 = vsub.f32 0.0, %v2391
          %v2408 = vsub.f32 0.0, %v2392
          %v2409 = vsub.f32 0.0, %v2393
          %v2410 = vsub.f32 0.0, %v2394
          %v2411 = vsub.f32 0.0, %v2395
          %v2412 = vsub.f32 0.0, %v2396
          %v2413 = vsub.f32 0.0, %v2397
          %v2414 = vsub.f32 0.0, %v2398
          %v2415 = vsub.f32 0.0, %v2399
          %v2416 = vmul.f32 %v2400, 1.442695
          %v2417 = vpow.pop %v2416
          %v2418 = vmul.f32 %v2401, 1.442695
          %v2419 = vpow.pop %v2418
          %v2420 = vmul.f32 %v2402, 1.442695
          %v2421 = vpow.pop %v2420
          %v2422 = vmul.f32 %v2403, 1.442695
          %v2423 = vpow.pop %v2422
          %v2424 = vmul.f32 %v2404, 1.442695
          %v2425 = vpow.pop %v2424
          %v2426 = vmul.f32 %v2405, 1.442695
          %v2427 = vpow.pop %v2426
          %v2428 = vmul.f32 %v2406, 1.442695
          %v2429 = vpow.pop %v2428
          %v2430 = vmul.f32 %v2407, 1.442695
          %v2431 = vpow.pop %v2430
          %v2432 = vmul.f32 %v2408, 1.442695
          %v2433 = vpow.pop %v2432
          %v2434 = vmul.f32 %v2409, 1.442695
          %v2435 = vpow.pop %v2434
          %v2436 = vmul.f32 %v2410, 1.442695
          %v2437 = vpow.pop %v2436
          %v2438 = vmul.f32 %v2411, 1.442695
          %v2439 = vpow.pop %v2438
          %v2440 = vmul.f32 %v2412, 1.442695
          %v2441 = vpow.pop %v2440
          %v2442 = vmul.f32 %v2413, 1.442695
          %v2443 = vpow.pop %v2442
          %v2444 = vmul.f32 %v2414, 1.442695
          %v2445 = vpow.pop %v2444
          %v2446 = vmul.f32 %v2415, 1.442695
          %v2447 = vpow.pop %v2446
          %v2448 = vadd.f32 %v2417, 1.0
          %v2449 = vadd.f32 %v2419, 1.0
          %v2450 = vadd.f32 %v2421, 1.0
          %v2451 = vadd.f32 %v2423, 1.0
          %v2452 = vadd.f32 %v2425, 1.0
          %v2453 = vadd.f32 %v2427, 1.0
          %v2454 = vadd.f32 %v2429, 1.0
          %v2455 = vadd.f32 %v2431, 1.0
          %v2456 = vadd.f32 %v2433, 1.0
          %v2457 = vadd.f32 %v2435, 1.0
          %v2458 = vadd.f32 %v2437, 1.0
          %v2459 = vadd.f32 %v2439, 1.0
          %v2460 = vadd.f32 %v2441, 1.0
          %v2461 = vadd.f32 %v2443, 1.0
          %v2462 = vadd.f32 %v2445, 1.0
          %v2463 = vadd.f32 %v2447, 1.0
          %v2464 = vrcp.pop %v2448
          %v2465 = vrcp.pop %v2449
          %v2466 = vrcp.pop %v2450
          %v2467 = vrcp.pop %v2451
          %v2468 = vrcp.pop %v2452
          %v2469 = vrcp.pop %v2453
          %v2470 = vrcp.pop %v2454
          %v2471 = vrcp.pop %v2455
          %v2472 = vrcp.pop %v2456
          %v2473 = vrcp.pop %v2457
          %v2474 = vrcp.pop %v2458
          %v2475 = vrcp.pop %v2459
          %v2476 = vrcp.pop %v2460
          %v2477 = vrcp.pop %v2461
          %v2478 = vrcp.pop %v2462
          %v2479 = vrcp.pop %v2463
          %s2480 = scalar_lea.vmem %s17, %s1475
          %vm2481 = vcmask 7168
          %2482 = vst.msk [vmem:[%s2480] sm:$0xff] %vm2481, %v2464
          %2483 = vst.msk [vmem:[%s2480 + $0x8] sm:$0xff] %vm2481, %v2465
          %2484 = vst.msk [vmem:[%s2480 + $0x10] sm:$0xff] %vm2481, %v2466
          %2485 = vst.msk [vmem:[%s2480 + $0x18] sm:$0xff] %vm2481, %v2467
          %2486 = vst.msk [vmem:[%s2480 + $0x20] sm:$0xff] %vm2481, %v2468
          %2487 = vst.msk [vmem:[%s2480 + $0x28] sm:$0xff] %vm2481, %v2469
          %2488 = vst.msk [vmem:[%s2480 + $0x30] sm:$0xff] %vm2481, %v2470
          %2489 = vst.msk [vmem:[%s2480 + $0x38] sm:$0xff] %vm2481, %v2471
          %2490 = vst.msk [vmem:[%s2480 + $0x40] sm:$0xff] %vm2481, %v2472
          %2491 = vst.msk [vmem:[%s2480 + $0x48] sm:$0xff] %vm2481, %v2473
          %2492 = vst.msk [vmem:[%s2480 + $0x50] sm:$0xff] %vm2481, %v2474
          %2493 = vst.msk [vmem:[%s2480 + $0x58] sm:$0xff] %vm2481, %v2475
          %2494 = vst.msk [vmem:[%s2480 + $0x60] sm:$0xff] %vm2481, %v2476
          %2495 = vst.msk [vmem:[%s2480 + $0x68] sm:$0xff] %vm2481, %v2477
          %2496 = vst.msk [vmem:[%s2480 + $0x70] sm:$0xff] %vm2481, %v2478
          %2497 = vst.msk [vmem:[%s2480 + $0x78] sm:$0xff] %vm2481, %v2479
        $region108: #{tpu_custom_call.1} parent=83 // loop_footer
          %s1474 = sadd.s32 1, %s1470
        $region109: #{tpu_custom_call.1} parent=83 // loop_footer_branch
          %1469 = sbr.rel target = $region105
        $region110: #{tpu_custom_call.1} parent=83 // loop_exit
          _
        // Predicated region
        $region111: #{tpu_custom_call.1} parent=83 // pred_check
          %p2498 = pneg %p385
        $region112: #{tpu_custom_call.1} parent=83 // pred_check_branch
          %2500 = sbr.rel (%p2498) target = $region114
        $region113: #{tpu_custom_call.1} parent=83 // pred_region
          %s2502 = ssub.s32 256, 256
          %2503 = vsyncadd [#allocation7], %s2502
          %s2504 = sshll.u32 [#allocation10], 4
          %s2505 = int_to_ptr.vmem [resolvable:$true] %s2504
          %2510 = dma.vmem_to_hbm [thread:$0]  %s2505, 256, %s16, [#allocation7], 128, 128, 8
        $region114: #{tpu_custom_call.1} parent=83 // pred_fallthru
          _
        // Predicated region
        $region115: #{tpu_custom_call.1} parent=83 // pred_check
          %p2511 = pneg %p406
        $region116: #{tpu_custom_call.1} parent=83 // pred_check_branch
          %2513 = sbr.rel (%p2511) target = $region118
        $region117: #{tpu_custom_call.1} parent=83 // pred_region
          _
        $region118: #{tpu_custom_call.1} parent=83 // pred_fallthru
          _
        // Predicated region
        $region119: #{tpu_custom_call.1} parent=83 // pred_check
          %p2514 = pneg %p385
        $region120: #{tpu_custom_call.1} parent=83 // pred_check_branch
          %2516 = sbr.rel (%p2514) target = $region122
        $region121: #{tpu_custom_call.1} parent=83 // pred_region
          %2517 = dma.done [#allocation7], 256
        $region122: #{tpu_custom_call.1} parent=83 // pred_fallthru
          _
        // Predicated region
        $region123: #{tpu_custom_call.1} parent=83 // pred_check
          %p2518 = pneg %p406
        $region124: #{tpu_custom_call.1} parent=83 // pred_check_branch
          %2520 = sbr.rel (%p2518) target = $region126
        $region125: #{tpu_custom_call.1} parent=83 // pred_region
          _
        $region126: #{tpu_custom_call.1} parent=83 // pred_fallthru
          _
      $region84: #{tpu_custom_call.1} parent=5 // pred_fallthru
        _
      %p2521 = scmp.le.s32.totalorder 2, %s31
      // Predicated region
      $region127: #{tpu_custom_call.1} parent=5 // pred_check
        %p2522 = pneg %p2521
      $region128: #{tpu_custom_call.1} parent=5 // pred_check_branch
        %2524 = sbr.rel (%p2522) target = $region130
      $region129: #{tpu_custom_call.1} parent=5 // pred_region
        %s2525 = ssub.s32 %s31, 2
      $region130: #{tpu_custom_call.1} parent=5 // pred_fallthru
        _
    $region6: #{tpu_custom_call.1} parent=1 // loop_footer
      %s35 = sadd.s32 1, %s31
    $region7: #{tpu_custom_call.1} parent=1 // loop_footer_branch
      %30 = sbr.rel target = $region3
    $region8: #{tpu_custom_call.1} parent=1 // loop_exit
      _
    %2526 = vsyncpa [#allocation6], 1
    %s2527 = scalar_lea.sflag [#allocation6], 1
    %2528 = vsyncpa %s2527, 1
    %2529 = vsyncpa [#allocation9], 1
    %2530 = vsyncpa [#allocation7], 1
    %s2531 = scalar_lea.sflag [#allocation7], 1
    %2532 = vsyncpa %s2531, 1

</llo_original>
